<compile_context>
chip_gen: v7x
topology: tpu7x:2x2x1
jax: 0.10.0
libtpu: 0.0.40
codegen_flags: <defaults>
</compile_context>

<pallas_src>
import functools

import jax
import jax.numpy as jnp
from jax import lax
from jax.experimental import pallas as pl
from jax.experimental.pallas import tpu as pltpu

# ----------------------------- model hyperparameters -----------------------------
DIM_E = 64          # self.dim_E
DIM_FEAT = 256      # args.base_model == 'LARP'  -> dim_feat = 256
HIDDEN = 256        # encoder_layer1 output
LR_LAMBDA = 0.5
REG_WEIGHT = 0.1
TEMP_VALUE = 2.0
NUM_SAMPLE = 0.5
LEAKY_SLOPE = 0.01  # torch default negative_slope for F.leaky_relu
EPS = 1e-12         # torch F.normalize eps


def _l2norm(x):
    # x / max(||x||, eps)  ==  x * rsqrt(max(||x||^2, eps^2))   (EUP rsqrt, no divide)
    ssq = jnp.sum(x * x, axis=-1, keepdims=True)
    return x * lax.rsqrt(jnp.maximum(ssq, EPS * EPS))


# ----------------------------- fused kernel -----------------------------
def _clcrec_fused_kernel(temp_value,
                         # scalar-prefetch refs (SMEM) -- drive index_maps only
                         uid_ref, items_ref,
                         # gathered / resident inputs (VMEM)
                         content_ref, w1_ref, b1_ref, w2_ref, b2_ref,
                         user_ref, item_ref, mask_ref,
                         # output (SMEM scalar)
                         out_ref,
                         # VMEM scratch, persistent across the grid
                         content_buf, emb_buf, user_buf):
    i = pl.program_id(0)

    # ---- gather phase: stage this row's gathered data into persistent scratch ----
    content_buf[pl.ds(i, 1), :] = content_ref[0]   # content_features[items[i]]
    emb_buf[pl.ds(i, 1), :] = item_ref[0]           # item_id_embedding[items[i]]
    user_buf[pl.ds(i, 1), :] = user_ref[0]          # user_id_embedding[uid[i]]

    # ---- final step: batched encoder + contrastive + reg losses ----
    @pl.when(i == pl.num_programs(0) - 1)
    def _():
        inv_temp = 1.0 / temp_value

        # encoder: feature = enc2(leaky_relu(enc1(normalize(content))))  (whole batch)
        cont = content_buf[...]                     # (B, DIM_FEAT) f32
        cn = _l2norm(cont)
        h = jnp.dot(cn.astype(jnp.bfloat16), w1_ref[...],
                    preferred_element_type=jnp.float32) + b1_ref[...]
        h = jnp.maximum(h, LEAKY_SLOPE * h)          # leaky_relu, slope in (0,1)
        feat = jnp.dot(h.astype(jnp.bfloat16), w2_ref[...],
                       preferred_element_type=jnp.float32) + b2_ref[...]   # (B, DIM_E)

        emb = emb_buf[...]                           # all_item_embedding   (B, DIM_E)
        user = user_buf[...]                         # user_embedding       (B, DIM_E)

        # all_item_input[i] = feat[i] if i in rand_index else emb[i]
        # (duplicate rand_index entries are benign: last-writer writes the same value)
        mf = mask_ref[...]                           # (B, 1) in {0, 1}
        inp = mf * feat + (1.0 - mf) * emb

        def infonce(a, b):
            # CE(logits = a @ b.T / temp, labels = arange(B)) = mean(lse - diag)
            a16 = a.astype(jnp.bfloat16)
            b16 = b.astype(jnp.bfloat16)
            logits = lax.dot_general(
                a16, b16, (((1,), (1,)), ((), ())),  # NT matmul, no explicit .T
                preferred_element_type=jnp.float32) * inv_temp
            m = jnp.max(logits, axis=-1, keepdims=True)
            lse = jnp.log(jnp.sum(jnp.exp(logits - m), axis=-1, keepdims=True)) + m
            diag = jnp.sum(a16.astype(jnp.float32) * b16.astype(jnp.float32),
                           axis=-1, keepdims=True) * inv_temp
            return jnp.mean(lse - diag)

        loss1 = infonce(_l2norm(emb), _l2norm(feat))   # head_embed vs head_feat
        loss2 = infonce(user, inp)

        reg = 0.5 * (jnp.mean(jnp.sqrt(jnp.sum(user * user, axis=1, keepdims=True)))
                     + jnp.mean(jnp.sqrt(jnp.sum(emb * emb, axis=1, keepdims=True))))

        out_ref[0] = (loss1 * LR_LAMBDA + loss2 * (1.0 - LR_LAMBDA)
                      + REG_WEIGHT * reg)


# ----------------------------- forward wrapper -----------------------------
@jax.jit
def clcrec_forward(params, content_features, uid, items, rand_index):
    uid = uid[:, 0].astype(jnp.int32)
    items = items[:, 0].astype(jnp.int32)
    batch = uid.shape[0]
    num_items = content_features.shape[0]
    num_bundles = params["user_id_embedding"].shape[0]

    # row-replacement scatter -> per-row {0,1} mask (last-writer equivalent)
    replace_mask = jnp.zeros((batch, 1), jnp.float32).at[rand_index].set(1.0)

    # free metadata reshapes so every gathered row block equals the full last-2 dims
    content3 = content_features.reshape(num_items, 1, DIM_FEAT)
    user3 = params["user_id_embedding"].reshape(num_bundles, 1, DIM_E)
    item3 = params["item_id_embedding"].reshape(num_items, 1, DIM_E)

    # bf16 weights: native MXU dtype on v6e/v7x, halves weight DMA bytes (f32 accumulate)
    w1 = params["enc1_w"].astype(jnp.bfloat16)
    w2 = params["enc2_w"].astype(jnp.bfloat16)
    b1 = params["enc1_b"].reshape(1, HIDDEN).astype(jnp.float32)
    b2 = params["enc2_b"].reshape(1, DIM_E).astype(jnp.float32)

    kernel = functools.partial(_clcrec_fused_kernel, TEMP_VALUE)

    out = pl.pallas_call(
        kernel,
        out_shape=jax.ShapeDtypeStruct((1,), jnp.float32),
        grid_spec=pltpu.PrefetchScalarGridSpec(
            num_scalar_prefetch=2,                       # uid, items
            grid=(batch,),
            in_specs=[
                # content row gathered by items[i]
                pl.BlockSpec((1, 1, DIM_FEAT), lambda i, u, it: (it[i], 0, 0)),
                # encoder weights/biases: constant block index -> fetched once, resident
                pl.BlockSpec((DIM_FEAT, HIDDEN), lambda i, *_: (0, 0)),
                pl.BlockSpec((1, HIDDEN), lambda i, *_: (0, 0)),
                pl.BlockSpec((HIDDEN, DIM_E), lambda i, *_: (0, 0)),
                pl.BlockSpec((1, DIM_E), lambda i, *_: (0, 0)),
                # user / item embedding rows gathered by uid[i] / items[i]
                pl.BlockSpec((1, 1, DIM_E), lambda i, u, it: (u[i], 0, 0)),
                pl.BlockSpec((1, 1, DIM_E), lambda i, u, it: (it[i], 0, 0)),
                # per-row replacement mask, fetched once
                pl.BlockSpec((batch, 1), lambda i, *_: (0, 0)),
            ],
            out_specs=pl.BlockSpec(memory_space=pltpu.MemorySpace.SMEM),
            scratch_shapes=[
                pltpu.VMEM((batch, DIM_FEAT), jnp.float32),   # gathered content rows
                pltpu.VMEM((batch, DIM_E), jnp.float32),      # all_item_embedding
                pltpu.VMEM((batch, DIM_E), jnp.float32),      # user_embedding
            ],
        ),
        compiler_params=pltpu.CompilerParams(
            # last grid step consumes scratch written by all previous steps
            dimension_semantics=("arbitrary",),
        ),
    )(uid, items, content3, w1, b1, w2, b2, user3, item3, replace_mask)
    return out[0]


# ----------------------------- parameter init -----------------------------
def init_params(key, num_bundles, num_items):
    ks = jax.random.split(key, 6)

    def xavier_normal(k, shape):
        fan_in, fan_out = shape[1], shape[0]
        std = (2.0 / (fan_in + fan_out)) ** 0.5
        return std * jax.random.normal(k, shape, jnp.float32)

    def linear_init(k, fan_in, fan_out):
        # torch nn.Linear default init: U(-1/sqrt(fan_in), 1/sqrt(fan_in))
        kw, kb = jax.random.split(k)
        bound = 1.0 / (fan_in ** 0.5)
        w = jax.random.uniform(kw, (fan_in, fan_out), jnp.float32, -bound, bound)
        b = jax.random.uniform(kb, (fan_out,), jnp.float32, -bound, bound)
        return w, b

    enc1_w, enc1_b = linear_init(ks[2], DIM_FEAT, HIDDEN)
    enc2_w, enc2_b = linear_init(ks[3], HIDDEN, DIM_E)
    return {
        "user_id_embedding": xavier_normal(ks[0], (num_bundles, DIM_E)),
        "item_id_embedding": xavier_normal(ks[1], (num_items, DIM_E)),
        "enc1_w": enc1_w, "enc1_b": enc1_b,
        "enc2_w": enc2_w, "enc2_b": enc2_b,
        # TODO(synk): MLP / att_weight_1 / att_weight_2 / bias / att_sum_layer are
        # declared in the torch __init__ but unused in forward(); not materialized.
    }


# ----------------------------- main -----------------------------
if __name__ == "__main__":
    num_bundles = 32
    num_items = 64
    batch = 16

    key = jax.random.PRNGKey(0)
    k_params, k_content, k_uid, k_items, k_rand = jax.random.split(key, 5)

    params = init_params(k_params, num_bundles, num_items)
    content_features = jax.random.normal(k_content, (num_items, DIM_FEAT), jnp.float32)

    uid = jax.random.randint(k_uid, (batch, 1), 0, num_bundles, jnp.int32)
    items = jax.random.randint(k_items, (batch, 1), 0, num_items, jnp.int32)
    # torch.randint(B, (int(B * num_sample),)) -> deterministic JAX equivalent
    rand_index = jax.random.randint(k_rand, (int(batch * NUM_SAMPLE),), 0, batch, jnp.int32)

    loss = clcrec_forward(params, content_features, uid, items, rand_index)
    jax.block_until_ready(loss)
    assert loss.shape == () and jnp.isfinite(loss)
    print("KERNEL_OK")
</pallas_src>

<mosaic_0001>
module attributes {stable_mosaic.version = 11 : i64} {
  func.func @_clcrec_fused_kernel(%arg0: i32, %arg1: memref<16xi32, #tpu.memory_space<smem>>, %arg2: memref<16xi32, #tpu.memory_space<smem>>, %arg3: memref<1x1x256xf32, #tpu.memory_space<vmem>>, %arg4: memref<256x256xbf16, #tpu.memory_space<vmem>>, %arg5: memref<1x256xf32, #tpu.memory_space<vmem>>, %arg6: memref<256x64xbf16, #tpu.memory_space<vmem>>, %arg7: memref<1x64xf32, #tpu.memory_space<vmem>>, %arg8: memref<1x1x64xf32, #tpu.memory_space<vmem>>, %arg9: memref<1x1x64xf32, #tpu.memory_space<vmem>>, %arg10: memref<16x1xf32, #tpu.memory_space<vmem>>, %arg11: memref<1xf32, #tpu.memory_space<smem>>, %arg12: memref<16x256xf32, #tpu.memory_space<vmem>>, %arg13: memref<16x64xf32, #tpu.memory_space<vmem>>, %arg14: memref<16x64xf32, #tpu.memory_space<vmem>>) attributes {dimension_semantics = [#tpu.dimension_semantics<arbitrary>], iteration_bounds = array<i64: 16>, scalar_prefetch = 2 : i64, scratch_operands = 3 : i64, tpu.core_type = #tpu.core_type<tc>, window_params = [{transform_indices = @transform_0, window_bounds = array<i64: 1, 1, 256>}, {pipeline_mode = #tpu.pipeline_mode<synchronous>, transform_indices = @transform_1, window_bounds = array<i64: 256, 256>}, {pipeline_mode = #tpu.pipeline_mode<synchronous>, transform_indices = @transform_2, window_bounds = array<i64: 1, 256>}, {pipeline_mode = #tpu.pipeline_mode<synchronous>, transform_indices = @transform_3, window_bounds = array<i64: 256, 64>}, {pipeline_mode = #tpu.pipeline_mode<synchronous>, transform_indices = @transform_4, window_bounds = array<i64: 1, 64>}, {transform_indices = @transform_5, window_bounds = array<i64: 1, 1, 64>}, {transform_indices = @transform_6, window_bounds = array<i64: 1, 1, 64>}, {pipeline_mode = #tpu.pipeline_mode<synchronous>, transform_indices = @transform_7, window_bounds = array<i64: 16, 1>}, {transform_indices = @transform_8, window_bounds = array<i64: 1>}]} {
    %c0 = arith.constant 0 : index
    %c0_0 = arith.constant 0 : index
    %c0_1 = arith.constant 0 : index
    %0 = vector.load %arg3[%c0, %c0_0, %c0_1] : memref<1x1x256xf32, #tpu.memory_space<vmem>>, vector<1x1x256xf32>
    %1 = vector.shape_cast %0 : vector<1x1x256xf32> to vector<1x256xf32>
    %2 = arith.index_cast %arg0 : i32 to index
    %c0_2 = arith.constant 0 : index
    %3 = vector.load %arg12[%2, %c0_2] : memref<16x256xf32, #tpu.memory_space<vmem>>, vector<1x256xf32>
    tpu.vector_store %arg12[%2, %c0_2], %1 {strides = array<i32>} : memref<16x256xf32, #tpu.memory_space<vmem>>, vector<1x256xf32>,
    %c0_3 = arith.constant 0 : index
    %c0_4 = arith.constant 0 : index
    %c0_5 = arith.constant 0 : index
    %4 = vector.load %arg9[%c0_3, %c0_4, %c0_5] : memref<1x1x64xf32, #tpu.memory_space<vmem>>, vector<1x1x64xf32>
    %5 = vector.shape_cast %4 : vector<1x1x64xf32> to vector<1x64xf32>
    %6 = arith.index_cast %arg0 : i32 to index
    %c0_6 = arith.constant 0 : index
    %7 = vector.load %arg13[%6, %c0_6] : memref<16x64xf32, #tpu.memory_space<vmem>>, vector<1x64xf32>
    tpu.vector_store %arg13[%6, %c0_6], %5 {strides = array<i32>} : memref<16x64xf32, #tpu.memory_space<vmem>>, vector<1x64xf32>,
    %c0_7 = arith.constant 0 : index
    %c0_8 = arith.constant 0 : index
    %c0_9 = arith.constant 0 : index
    %8 = vector.load %arg8[%c0_7, %c0_8, %c0_9] : memref<1x1x64xf32, #tpu.memory_space<vmem>>, vector<1x1x64xf32>
    %9 = vector.shape_cast %8 : vector<1x1x64xf32> to vector<1x64xf32>
    %10 = arith.index_cast %arg0 : i32 to index
    %c0_10 = arith.constant 0 : index
    %11 = vector.load %arg14[%10, %c0_10] : memref<16x64xf32, #tpu.memory_space<vmem>>, vector<1x64xf32>
    tpu.vector_store %arg14[%10, %c0_10], %9 {strides = array<i32>} : memref<16x64xf32, #tpu.memory_space<vmem>>, vector<1x64xf32>,
    %c15_i32 = arith.constant 15 : i32
    %12 = arith.cmpi eq, %arg0, %c15_i32 : i32
    %13 = arith.extui %12 : i1 to i32
    %c0_i32 = arith.constant 0 : i32
    %14 = arith.cmpi ne, %13, %c0_i32 : i32
    scf.if %14 {
      %c0_11 = arith.constant 0 : index
      %c0_12 = arith.constant 0 : index
      %15 = vector.load %arg12[%c0_11, %c0_12] : memref<16x256xf32, #tpu.memory_space<vmem>>, vector<16x256xf32>
      %16 = arith.mulf %15, %15 : vector<16x256xf32>
      %cst = arith.constant dense<0.000000e+00> : vector<16xf32>
      %17 = vector.multi_reduction <add>, %16, %cst [1] : vector<16x256xf32> to vector<16xf32>
      %18 = vector.shape_cast %17 : vector<16xf32> to vector<16x1xf32>
      %cst_13 = arith.constant 1.000000e-24 : f32
      %19 = vector.broadcast %cst_13 : f32 to vector<16x1xf32>
      %20 = arith.maximumf %18, %19 : vector<16x1xf32>
      %21 = math.rsqrt %20 : vector<16x1xf32>
      %22 = vector.broadcast %21 : vector<16x1xf32> to vector<16x256xf32>
      %23 = arith.mulf %15, %22 : vector<16x256xf32>
      %24 = arith.truncf %23 : vector<16x256xf32> to vector<16x256xbf16>
      %c0_14 = arith.constant 0 : index
      %c0_15 = arith.constant 0 : index
      %25 = vector.load %arg4[%c0_14, %c0_15] : memref<256x256xbf16, #tpu.memory_space<vmem>>, vector<256x256xbf16>
      %cst_16 = arith.constant dense<0.000000e+00> : vector<16x256xf32>
      %26 = tpu.matmul %24, %25, %cst_16 {dimension_numbers = #tpu.dot_dimension_numbers<[1], [0], [0], [1], [0, 0, 1, 1], [], []>} : vector<16x256xbf16>, vector<256x256xbf16>, vector<16x256xf32> -> vector<16x256xf32>
      %c0_17 = arith.constant 0 : index
      %c0_18 = arith.constant 0 : index
      %27 = vector.load %arg5[%c0_17, %c0_18] : memref<1x256xf32, #tpu.memory_space<vmem>>, vector<1x256xf32>
      %28 = vector.broadcast %27 : vector<1x256xf32> to vector<16x256xf32>
      %29 = arith.addf %26, %28 : vector<16x256xf32>
      %cst_19 = arith.constant 0.00999999977 : f32
      %30 = vector.broadcast %cst_19 : f32 to vector<16x256xf32>
      %31 = arith.mulf %30, %29 : vector<16x256xf32>
      %32 = arith.maximumf %29, %31 : vector<16x256xf32>
      %33 = arith.truncf %32 : vector<16x256xf32> to vector<16x256xbf16>
      %c0_20 = arith.constant 0 : index
      %c0_21 = arith.constant 0 : index
      %34 = vector.load %arg6[%c0_20, %c0_21] : memref<256x64xbf16, #tpu.memory_space<vmem>>, vector<256x64xbf16>
      %cst_22 = arith.constant dense<0.000000e+00> : vector<16x64xf32>
      %35 = tpu.matmul %33, %34, %cst_22 {dimension_numbers = #tpu.dot_dimension_numbers<[1], [0], [0], [1], [0, 0, 1, 1], [], []>} : vector<16x256xbf16>, vector<256x64xbf16>, vector<16x64xf32> -> vector<16x64xf32>
      %c0_23 = arith.constant 0 : index
      %c0_24 = arith.constant 0 : index
      %36 = vector.load %arg7[%c0_23, %c0_24] : memref<1x64xf32, #tpu.memory_space<vmem>>, vector<1x64xf32>
      %37 = vector.broadcast %36 : vector<1x64xf32> to vector<16x64xf32>
      %38 = arith.addf %35, %37 : vector<16x64xf32>
      %c0_25 = arith.constant 0 : index
      %c0_26 = arith.constant 0 : index
      %39 = vector.load %arg13[%c0_25, %c0_26] : memref<16x64xf32, #tpu.memory_space<vmem>>, vector<16x64xf32>
      %c0_27 = arith.constant 0 : index
      %c0_28 = arith.constant 0 : index
      %40 = vector.load %arg14[%c0_27, %c0_28] : memref<16x64xf32, #tpu.memory_space<vmem>>, vector<16x64xf32>
      %c0_29 = arith.constant 0 : index
      %c0_30 = arith.constant 0 : index
      %41 = vector.load %arg10[%c0_29, %c0_30] : memref<16x1xf32, #tpu.memory_space<vmem>>, vector<16x1xf32>
      %42 = vector.broadcast %41 : vector<16x1xf32> to vector<16x64xf32>
      %43 = arith.mulf %42, %38 : vector<16x64xf32>
      %cst_31 = arith.constant 1.000000e+00 : f32
      %44 = vector.broadcast %cst_31 : f32 to vector<16x1xf32>
      %45 = arith.subf %44, %41 : vector<16x1xf32>
      %46 = vector.broadcast %45 : vector<16x1xf32> to vector<16x64xf32>
      %47 = arith.mulf %46, %39 : vector<16x64xf32>
      %48 = arith.addf %43, %47 : vector<16x64xf32>
      %49 = arith.mulf %39, %39 : vector<16x64xf32>
      %cst_32 = arith.constant dense<0.000000e+00> : vector<16xf32>
      %50 = vector.multi_reduction <add>, %49, %cst_32 [1] : vector<16x64xf32> to vector<16xf32>
      %51 = vector.shape_cast %50 : vector<16xf32> to vector<16x1xf32>
      %cst_33 = arith.constant 1.000000e-24 : f32
      %52 = vector.broadcast %cst_33 : f32 to vector<16x1xf32>
      %53 = arith.maximumf %51, %52 : vector<16x1xf32>
      %54 = math.rsqrt %53 : vector<16x1xf32>
      %55 = vector.broadcast %54 : vector<16x1xf32> to vector<16x64xf32>
      %56 = arith.mulf %39, %55 : vector<16x64xf32>
      %57 = arith.mulf %38, %38 : vector<16x64xf32>
      %cst_34 = arith.constant dense<0.000000e+00> : vector<16xf32>
      %58 = vector.multi_reduction <add>, %57, %cst_34 [1] : vector<16x64xf32> to vector<16xf32>
      %59 = vector.shape_cast %58 : vector<16xf32> to vector<16x1xf32>
      %cst_35 = arith.constant 1.000000e-24 : f32
      %60 = vector.broadcast %cst_35 : f32 to vector<16x1xf32>
      %61 = arith.maximumf %59, %60 : vector<16x1xf32>
      %62 = math.rsqrt %61 : vector<16x1xf32>
      %63 = vector.broadcast %62 : vector<16x1xf32> to vector<16x64xf32>
      %64 = arith.mulf %38, %63 : vector<16x64xf32>
      %65 = arith.truncf %56 : vector<16x64xf32> to vector<16x64xbf16>
      %66 = arith.truncf %64 : vector<16x64xf32> to vector<16x64xbf16>
      %cst_36 = arith.constant dense<0.000000e+00> : vector<16x16xf32>
      %67 = tpu.matmul %65, %66, %cst_36 {dimension_numbers = #tpu.dot_dimension_numbers<[1], [1], [0], [0], [0, 0, 1, 0], [], []>} : vector<16x64xbf16>, vector<16x64xbf16>, vector<16x16xf32> -> vector<16x16xf32>
      %cst_37 = arith.constant 5.000000e-01 : f32
      %68 = vector.broadcast %cst_37 : f32 to vector<16x16xf32>
      %69 = arith.mulf %67, %68 : vector<16x16xf32>
      %cst_38 = arith.constant dense<0xFF800000> : vector<16xf32>
      %70 = vector.multi_reduction <maximumf>, %69, %cst_38 [1] : vector<16x16xf32> to vector<16xf32>
      %71 = vector.shape_cast %70 : vector<16xf32> to vector<16x1xf32>
      %72 = vector.broadcast %71 : vector<16x1xf32> to vector<16x16xf32>
      %73 = arith.subf %69, %72 : vector<16x16xf32>
      %74 = math.exp %73 : vector<16x16xf32>
      %cst_39 = arith.constant dense<0.000000e+00> : vector<16xf32>
      %75 = vector.multi_reduction <add>, %74, %cst_39 [1] : vector<16x16xf32> to vector<16xf32>
      %76 = vector.shape_cast %75 : vector<16xf32> to vector<16x1xf32>
      %77 = math.log %76 : vector<16x1xf32>
      %78 = arith.addf %77, %71 : vector<16x1xf32>
      %79 = arith.extf %65 : vector<16x64xbf16> to vector<16x64xf32>
      %80 = arith.extf %66 : vector<16x64xbf16> to vector<16x64xf32>
      %81 = arith.mulf %79, %80 : vector<16x64xf32>
      %cst_40 = arith.constant dense<0.000000e+00> : vector<16xf32>
      %82 = vector.multi_reduction <add>, %81, %cst_40 [1] : vector<16x64xf32> to vector<16xf32>
      %83 = vector.shape_cast %82 : vector<16xf32> to vector<16x1xf32>
      %cst_41 = arith.constant 5.000000e-01 : f32
      %84 = vector.broadcast %cst_41 : f32 to vector<16x1xf32>
      %85 = arith.mulf %83, %84 : vector<16x1xf32>
      %86 = arith.subf %78, %85 : vector<16x1xf32>
      %87 = vector.shape_cast %86 : vector<16x1xf32> to vector<1x16x1xf32>
      %cst_42 = arith.constant dense<0.000000e+00> : vector<1xf32>
      %88 = vector.multi_reduction <add>, %87, %cst_42 [1, 2] : vector<1x16x1xf32> to vector<1xf32>
      %89 = vector.shape_cast %88 : vector<1xf32> to vector<1x1x1xf32>
      %90 = vector.extract %89[0, 0, 0] : f32 from vector<1x1x1xf32>
      %cst_43 = arith.constant 1.600000e+01 : f32
      %91 = arith.divf %90, %cst_43 : f32
      %92 = arith.truncf %40 : vector<16x64xf32> to vector<16x64xbf16>
      %93 = arith.truncf %48 : vector<16x64xf32> to vector<16x64xbf16>
      %cst_44 = arith.constant dense<0.000000e+00> : vector<16x16xf32>
      %94 = tpu.matmul %92, %93, %cst_44 {dimension_numbers = #tpu.dot_dimension_numbers<[1], [1], [0], [0], [0, 0, 1, 0], [], []>} : vector<16x64xbf16>, vector<16x64xbf16>, vector<16x16xf32> -> vector<16x16xf32>
      %cst_45 = arith.constant 5.000000e-01 : f32
      %95 = vector.broadcast %cst_45 : f32 to vector<16x16xf32>
      %96 = arith.mulf %94, %95 : vector<16x16xf32>
      %cst_46 = arith.constant dense<0xFF800000> : vector<16xf32>
      %97 = vector.multi_reduction <maximumf>, %96, %cst_46 [1] : vector<16x16xf32> to vector<16xf32>
      %98 = vector.shape_cast %97 : vector<16xf32> to vector<16x1xf32>
      %99 = vector.broadcast %98 : vector<16x1xf32> to vector<16x16xf32>
      %100 = arith.subf %96, %99 : vector<16x16xf32>
      %101 = math.exp %100 : vector<16x16xf32>
      %cst_47 = arith.constant dense<0.000000e+00> : vector<16xf32>
      %102 = vector.multi_reduction <add>, %101, %cst_47 [1] : vector<16x16xf32> to vector<16xf32>
      %103 = vector.shape_cast %102 : vector<16xf32> to vector<16x1xf32>
      %104 = math.log %103 : vector<16x1xf32>
      %105 = arith.addf %104, %98 : vector<16x1xf32>
      %106 = arith.extf %92 : vector<16x64xbf16> to vector<16x64xf32>
      %107 = arith.extf %93 : vector<16x64xbf16> to vector<16x64xf32>
      %108 = arith.mulf %106, %107 : vector<16x64xf32>
      %cst_48 = arith.constant dense<0.000000e+00> : vector<16xf32>
      %109 = vector.multi_reduction <add>, %108, %cst_48 [1] : vector<16x64xf32> to vector<16xf32>
      %110 = vector.shape_cast %109 : vector<16xf32> to vector<16x1xf32>
      %cst_49 = arith.constant 5.000000e-01 : f32
      %111 = vector.broadcast %cst_49 : f32 to vector<16x1xf32>
      %112 = arith.mulf %110, %111 : vector<16x1xf32>
      %113 = arith.subf %105, %112 : vector<16x1xf32>
      %114 = vector.shape_cast %113 : vector<16x1xf32> to vector<1x16x1xf32>
      %cst_50 = arith.constant dense<0.000000e+00> : vector<1xf32>
      %115 = vector.multi_reduction <add>, %114, %cst_50 [1, 2] : vector<1x16x1xf32> to vector<1xf32>
      %116 = vector.shape_cast %115 : vector<1xf32> to vector<1x1x1xf32>
      %117 = vector.extract %116[0, 0, 0] : f32 from vector<1x1x1xf32>
      %cst_51 = arith.constant 1.600000e+01 : f32
      %118 = arith.divf %117, %cst_51 : f32
      %119 = arith.mulf %40, %40 : vector<16x64xf32>
      %cst_52 = arith.constant dense<0.000000e+00> : vector<16xf32>
      %120 = vector.multi_reduction <add>, %119, %cst_52 [1] : vector<16x64xf32> to vector<16xf32>
      %121 = vector.shape_cast %120 : vector<16xf32> to vector<16x1xf32>
      %122 = math.sqrt %121 : vector<16x1xf32>
      %123 = vector.shape_cast %122 : vector<16x1xf32> to vector<1x16x1xf32>
      %cst_53 = arith.constant dense<0.000000e+00> : vector<1xf32>
      %124 = vector.multi_reduction <add>, %123, %cst_53 [1, 2] : vector<1x16x1xf32> to vector<1xf32>
      %125 = vector.shape_cast %124 : vector<1xf32> to vector<1x1x1xf32>
      %126 = vector.extract %125[0, 0, 0] : f32 from vector<1x1x1xf32>
      %cst_54 = arith.constant 1.600000e+01 : f32
      %127 = arith.divf %126, %cst_54 : f32
      %128 = arith.mulf %39, %39 : vector<16x64xf32>
      %cst_55 = arith.constant dense<0.000000e+00> : vector<16xf32>
      %129 = vector.multi_reduction <add>, %128, %cst_55 [1] : vector<16x64xf32> to vector<16xf32>
      %130 = vector.shape_cast %129 : vector<16xf32> to vector<16x1xf32>
      %131 = math.sqrt %130 : vector<16x1xf32>
      %132 = vector.shape_cast %131 : vector<16x1xf32> to vector<1x16x1xf32>
      %cst_56 = arith.constant dense<0.000000e+00> : vector<1xf32>
      %133 = vector.multi_reduction <add>, %132, %cst_56 [1, 2] : vector<1x16x1xf32> to vector<1xf32>
      %134 = vector.shape_cast %133 : vector<1xf32> to vector<1x1x1xf32>
      %135 = vector.extract %134[0, 0, 0] : f32 from vector<1x1x1xf32>
      %cst_57 = arith.constant 1.600000e+01 : f32
      %136 = arith.divf %135, %cst_57 : f32
      %137 = arith.addf %127, %136 : f32
      %cst_58 = arith.constant 5.000000e-01 : f32
      %138 = arith.mulf %cst_58, %137 : f32
      %cst_59 = arith.constant 5.000000e-01 : f32
      %139 = arith.mulf %91, %cst_59 : f32
      %cst_60 = arith.constant 5.000000e-01 : f32
      %140 = arith.mulf %118, %cst_60 : f32
      %141 = arith.addf %139, %140 : f32
      %cst_61 = arith.constant 1.000000e-01 : f32
      %142 = arith.mulf %cst_61, %138 : f32
      %143 = arith.addf %141, %142 : f32
      %c0_62 = arith.constant 0 : index
      %144 = memref.load %arg11[%c0_62] : memref<1xf32, #tpu.memory_space<smem>>
      memref.store %143, %arg11[%c0_62] : memref<1xf32, #tpu.memory_space<smem>>
    } else {
    }
    return
  }
  func.func @transform_0(%arg0: i32, %arg1: memref<16xi32, #tpu.memory_space<smem>>, %arg2: memref<16xi32, #tpu.memory_space<smem>>) -> (i32, i32, i32) {
    %0 = arith.index_cast %arg0 : i32 to index
    %1 = memref.load %arg2[%0] : memref<16xi32, #tpu.memory_space<smem>>
    %c0_i32 = arith.constant 0 : i32
    %c0_i32_0 = arith.constant 0 : i32
    %c0_i32_1 = arith.constant 0 : i32
    return %1, %c0_i32, %c0_i32_0 : i32, i32, i32
  }
  func.func @transform_1(%arg0: i32, %arg1: memref<16xi32, #tpu.memory_space<smem>>, %arg2: memref<16xi32, #tpu.memory_space<smem>>) -> (i32, i32) {
    %c0_i32 = arith.constant 0 : i32
    %c0_i32_0 = arith.constant 0 : i32
    %c0_i32_1 = arith.constant 0 : i32
    return %c0_i32, %c0_i32_0 : i32, i32
  }
  func.func @transform_2(%arg0: i32, %arg1: memref<16xi32, #tpu.memory_space<smem>>, %arg2: memref<16xi32, #tpu.memory_space<smem>>) -> (i32, i32) {
    %c0_i32 = arith.constant 0 : i32
    %c0_i32_0 = arith.constant 0 : i32
    %c0_i32_1 = arith.constant 0 : i32
    return %c0_i32, %c0_i32_0 : i32, i32
  }
  func.func @transform_3(%arg0: i32, %arg1: memref<16xi32, #tpu.memory_space<smem>>, %arg2: memref<16xi32, #tpu.memory_space<smem>>) -> (i32, i32) {
    %c0_i32 = arith.constant 0 : i32
    %c0_i32_0 = arith.constant 0 : i32
    %c0_i32_1 = arith.constant 0 : i32
    return %c0_i32, %c0_i32_0 : i32, i32
  }
  func.func @transform_4(%arg0: i32, %arg1: memref<16xi32, #tpu.memory_space<smem>>, %arg2: memref<16xi32, #tpu.memory_space<smem>>) -> (i32, i32) {
    %c0_i32 = arith.constant 0 : i32
    %c0_i32_0 = arith.constant 0 : i32
    %c0_i32_1 = arith.constant 0 : i32
    return %c0_i32, %c0_i32_0 : i32, i32
  }
  func.func @transform_5(%arg0: i32, %arg1: memref<16xi32, #tpu.memory_space<smem>>, %arg2: memref<16xi32, #tpu.memory_space<smem>>) -> (i32, i32, i32) {
    %0 = arith.index_cast %arg0 : i32 to index
    %1 = memref.load %arg1[%0] : memref<16xi32, #tpu.memory_space<smem>>
    %c0_i32 = arith.constant 0 : i32
    %c0_i32_0 = arith.constant 0 : i32
    %c0_i32_1 = arith.constant 0 : i32
    return %1, %c0_i32, %c0_i32_0 : i32, i32, i32
  }
  func.func @transform_6(%arg0: i32, %arg1: memref<16xi32, #tpu.memory_space<smem>>, %arg2: memref<16xi32, #tpu.memory_space<smem>>) -> (i32, i32, i32) {
    %0 = arith.index_cast %arg0 : i32 to index
    %1 = memref.load %arg2[%0] : memref<16xi32, #tpu.memory_space<smem>>
    %c0_i32 = arith.constant 0 : i32
    %c0_i32_0 = arith.constant 0 : i32
    %c0_i32_1 = arith.constant 0 : i32
    return %1, %c0_i32, %c0_i32_0 : i32, i32, i32
  }
  func.func @transform_7(%arg0: i32, %arg1: memref<16xi32, #tpu.memory_space<smem>>, %arg2: memref<16xi32, #tpu.memory_space<smem>>) -> (i32, i32) {
    %c0_i32 = arith.constant 0 : i32
    %c0_i32_0 = arith.constant 0 : i32
    %c0_i32_1 = arith.constant 0 : i32
    return %c0_i32, %c0_i32_0 : i32, i32
  }
  func.func @transform_8(%arg0: i32, %arg1: memref<16xi32, #tpu.memory_space<smem>>, %arg2: memref<16xi32, #tpu.memory_space<smem>>) -> i32 {
    %c0_i32 = arith.constant 0 : i32
    %c0_i32_0 = arith.constant 0 : i32
    return %c0_i32 : i32
  }
}

</mosaic_0001>

<llo_original>
// kernel: clcrec_forward.1
$region0: #{clcrec_forward.1}
  #allocation0 [shape = 'u32[]', space=smem, size = 0x4, offset = 0x4, fixed_abs, tag = 'smem constant byte address 0x4 - core index']
  #allocation1 [shape = 'u32[144,128]{1,0:T(1,128)}', space=vmem, size = 0x12000, scoped, tag = 'internal scratch']
  #allocation2 [shape = 'f32[16,256]{1,0:T(8,128)}', space=vmem, size = 0x4000, scoped, tag = 'scratch operand']
  #allocation3 [shape = 'f32[16,64]{1,0:T(8,128)}', space=vmem, size = 0x2000, scoped, tag = 'scratch operand']
  #allocation4 [shape = 'f32[16,64]{1,0:T(8,128)}', space=vmem, size = 0x2000, scoped, tag = 'scratch operand']
  #allocation5 [shape = 's32[1]{0}', space=sflag, size = 0x4, scoped, tag = 'scoped memory for clcrec_forward.1']
  #allocation6 [shape = 'u8[512]{0}', space=smem, size = 0x200, scoped, tag = 'prefetched SMEM operand 0']
  #allocation7 [shape = 'u8[512]{0}', space=smem, size = 0x200, scoped, tag = 'prefetched SMEM operand 1']
  %s0 = inlined_call_operand.vmem [shape: s32[16], index: 0, kind: input, shape index: {}]
  %s1 = inlined_call_operand.vmem [shape: s32[16], index: 1, kind: input, shape index: {}]
  %s2 = inlined_call_operand.vmem [shape: f32[64,1,256], index: 2, kind: input, shape index: {}]
  %s3 = inlined_call_operand.vmem [shape: bf16[256,256], index: 3, kind: input, shape index: {}]
  %s4 = inlined_call_operand.vmem [shape: f32[1,256], index: 4, kind: input, shape index: {}]
  %s5 = inlined_call_operand.vmem [shape: bf16[256,64], index: 5, kind: input, shape index: {}]
  %s6 = inlined_call_operand.vmem [shape: f32[1,64], index: 6, kind: input, shape index: {}]
  %s7 = inlined_call_operand.vmem [shape: f32[32,1,64], index: 7, kind: input, shape index: {}]
  %s8 = inlined_call_operand.vmem [shape: f32[64,1,64], index: 8, kind: input, shape index: {}]
  %s9 = inlined_call_operand.vmem [shape: f32[16,1], index: 9, kind: input, shape index: {}]
  %s10 = inlined_call_operand.hbm [shape: f32[1], index: 10, kind: output, shape index: {}]
  %s11 = sld [smem:[#allocation0]]
  $region69: #{clcrec_forward.1} parent=0
    _
  %s13 = ssub.s32 1, %s11
  %s14 = scalar_select 0, %s13, %s11
  %s15 = sshll.u32 %s0, 4
  %s16 = int_to_ptr.vmem [resolvable:$true] %s15
  %18 = dma.vmem_to_smem %s16, 16, [#allocation6], [#allocation5]
  %s19 = sshll.u32 %s1, 4
  %s20 = int_to_ptr.vmem [resolvable:$true] %s19
  %22 = dma.vmem_to_smem %s20, 16, [#allocation7], [#allocation5]
  %23 = dma.done [#allocation5], 32
  %24 = sfence
  $region1: #{clcrec_forward.1} parent=0
    #allocation8 [shape = 'u8[512]{0}', space=smem, size = 0x200, scoped, tag = 'output window, operand 0, single buffered']
    #allocation9 [shape = 's32[2]{0}', space=sflag, size = 0x8, scoped, tag = 'scoped memory for clcrec_forward.1']
    %25 = vsyncpa [#allocation9], 0
    loop: start=0, step=1, limit=18
    $region2: #{clcrec_forward.1} parent=1 // loop_pre_header
      _
    $region3: #{clcrec_forward.1} parent=1 // loop_header
      %s27 = sphi 0, %s31
      %p28 = scmp.ge.s32.totalorder %s27, 18
      %s39 = sphi 0, %s41
      %s42 = sphi 0, %s39
      %s43 = sphi 0, %s42
      %s59 = sphi 0, %s43
      %s63 = sphi 0, %s63
      %s65 = sphi 0, %s63
      %s66 = sphi 0, %s65
      %s80 = sphi 0, %s66
      %s84 = sphi 0, %s84
      %s86 = sphi 0, %s84
      %s87 = sphi 0, %s86
      %s101 = sphi 0, %s87
      %s105 = sphi 0, %s105
      %s107 = sphi 0, %s105
      %s108 = sphi 0, %s107
      %s122 = sphi 0, %s108
      %s126 = sphi 0, %s126
      %s128 = sphi 0, %s126
      %s129 = sphi 0, %s128
      %s143 = sphi 0, %s129
      %s151 = sphi 0, %s153
      %s154 = sphi 0, %s151
      %s155 = sphi 0, %s154
      %s171 = sphi 0, %s155
      %s179 = sphi 0, %s181
      %s182 = sphi 0, %s179
      %s183 = sphi 0, %s182
      %s199 = sphi 0, %s183
      %s203 = sphi 0, %s203
      %s205 = sphi 0, %s203
      %s206 = sphi 0, %s205
      %s220 = sphi 0, %s206
      %s224 = sphi 0, %s224
      %s226 = sphi 0, %s224
      %s227 = sphi 0, %s226
      %s241 = sphi 0, %s227
    $region4: #{clcrec_forward.1} parent=1 // loop_header_branch
      %30 = sbr.rel (%p28) target = $region8
    $region5: #{clcrec_forward.1} parent=1 // loop_body
      %s32 = ssub.s32 %s27, 1
      %s33 = ssub.s32 %s27, 2
      %s34 = sadd.s32 %s27, 1
      %s35 = sld [smem:[#allocation7 + %s27]]
      %s36 = sld [smem:[#allocation7 + %s34]]
      %s37 = ssub.s32 %s35, %s36
      %p38 = scmp.eq.s32.totalorder %s37, 0
      %s40 = sadd.s32 %s39, 1
      %s41 = scalar_select %p38, %s39, %s40
      %p44 = pneg %p38
      %p45 = scmp.eq.s32.totalorder %s27, 15
      %p46 = por %p44, %p45
      %p47 = scmp.ne.s32.totalorder %s39, %s42
      %p48 = scmp.eq.s32.totalorder %s27, 0
      %p49 = por %p47, %p48
      %p50 = scmp.ne.s32.totalorder %s39, %s42
      %p51 = scmp.eq.s32.totalorder %s32, 15
      %p52 = por %p50, %p51
      %p53 = scmp.ne.s32.totalorder %s42, %s43
      %p54 = scmp.eq.s32.totalorder %s32, 0
      %p55 = por %p53, %p54
      %p56 = scmp.ne.s32.totalorder %s42, %s43
      %p57 = scmp.eq.s32.totalorder %s33, 15
      %p58 = por %p56, %p57
      %p60 = scmp.ne.s32.totalorder %s43, %s59
      %p61 = scmp.eq.s32.totalorder %s33, 0
      %p62 = por %p60, %p61
      %s64 = sadd.s32 %s63, 1
      %p67 = scmp.eq.s32.totalorder %s27, 15
      %p68 = scmp.ne.s32.totalorder %s63, %s65
      %p69 = scmp.eq.s32.totalorder %s27, 0
      %p70 = por %p68, %p69
      %p71 = scmp.ne.s32.totalorder %s63, %s65
      %p72 = scmp.eq.s32.totalorder %s32, 15
      %p73 = por %p71, %p72
      %p74 = scmp.ne.s32.totalorder %s65, %s66
      %p75 = scmp.eq.s32.totalorder %s32, 0
      %p76 = por %p74, %p75
      %p77 = scmp.ne.s32.totalorder %s65, %s66
      %p78 = scmp.eq.s32.totalorder %s33, 15
      %p79 = por %p77, %p78
      %p81 = scmp.ne.s32.totalorder %s66, %s80
      %p82 = scmp.eq.s32.totalorder %s33, 0
      %p83 = por %p81, %p82
      %s85 = sadd.s32 %s84, 1
      %p88 = scmp.eq.s32.totalorder %s27, 15
      %p89 = scmp.ne.s32.totalorder %s84, %s86
      %p90 = scmp.eq.s32.totalorder %s27, 0
      %p91 = por %p89, %p90
      %p92 = scmp.ne.s32.totalorder %s84, %s86
      %p93 = scmp.eq.s32.totalorder %s32, 15
      %p94 = por %p92, %p93
      %p95 = scmp.ne.s32.totalorder %s86, %s87
      %p96 = scmp.eq.s32.totalorder %s32, 0
      %p97 = por %p95, %p96
      %p98 = scmp.ne.s32.totalorder %s86, %s87
      %p99 = scmp.eq.s32.totalorder %s33, 15
      %p100 = por %p98, %p99
      %p102 = scmp.ne.s32.totalorder %s87, %s101
      %p103 = scmp.eq.s32.totalorder %s33, 0
      %p104 = por %p102, %p103
      %s106 = sadd.s32 %s105, 1
      %p109 = scmp.eq.s32.totalorder %s27, 15
      %p110 = scmp.ne.s32.totalorder %s105, %s107
      %p111 = scmp.eq.s32.totalorder %s27, 0
      %p112 = por %p110, %p111
      %p113 = scmp.ne.s32.totalorder %s105, %s107
      %p114 = scmp.eq.s32.totalorder %s32, 15
      %p115 = por %p113, %p114
      %p116 = scmp.ne.s32.totalorder %s107, %s108
      %p117 = scmp.eq.s32.totalorder %s32, 0
      %p118 = por %p116, %p117
      %p119 = scmp.ne.s32.totalorder %s107, %s108
      %p120 = scmp.eq.s32.totalorder %s33, 15
      %p121 = por %p119, %p120
      %p123 = scmp.ne.s32.totalorder %s108, %s122
      %p124 = scmp.eq.s32.totalorder %s33, 0
      %p125 = por %p123, %p124
      %s127 = sadd.s32 %s126, 1
      %p130 = scmp.eq.s32.totalorder %s27, 15
      %p131 = scmp.ne.s32.totalorder %s126, %s128
      %p132 = scmp.eq.s32.totalorder %s27, 0
      %p133 = por %p131, %p132
      %p134 = scmp.ne.s32.totalorder %s126, %s128
      %p135 = scmp.eq.s32.totalorder %s32, 15
      %p136 = por %p134, %p135
      %p137 = scmp.ne.s32.totalorder %s128, %s129
      %p138 = scmp.eq.s32.totalorder %s32, 0
      %p139 = por %p137, %p138
      %p140 = scmp.ne.s32.totalorder %s128, %s129
      %p141 = scmp.eq.s32.totalorder %s33, 15
      %p142 = por %p140, %p141
      %p144 = scmp.ne.s32.totalorder %s129, %s143
      %p145 = scmp.eq.s32.totalorder %s33, 0
      %p146 = por %p144, %p145
      %s147 = sld [smem:[#allocation6 + %s27]]
      %s148 = sld [smem:[#allocation6 + %s34]]
      %s149 = ssub.s32 %s147, %s148
      %p150 = scmp.eq.s32.totalorder %s149, 0
      %s152 = sadd.s32 %s151, 1
      %s153 = scalar_select %p150, %s151, %s152
      %p156 = pneg %p150
      %p157 = scmp.eq.s32.totalorder %s27, 15
      %p158 = por %p156, %p157
      %p159 = scmp.ne.s32.totalorder %s151, %s154
      %p160 = scmp.eq.s32.totalorder %s27, 0
      %p161 = por %p159, %p160
      %p162 = scmp.ne.s32.totalorder %s151, %s154
      %p163 = scmp.eq.s32.totalorder %s32, 15
      %p164 = por %p162, %p163
      %p165 = scmp.ne.s32.totalorder %s154, %s155
      %p166 = scmp.eq.s32.totalorder %s32, 0
      %p167 = por %p165, %p166
      %p168 = scmp.ne.s32.totalorder %s154, %s155
      %p169 = scmp.eq.s32.totalorder %s33, 15
      %p170 = por %p168, %p169
      %p172 = scmp.ne.s32.totalorder %s155, %s171
      %p173 = scmp.eq.s32.totalorder %s33, 0
      %p174 = por %p172, %p173
      %s175 = sld [smem:[#allocation7 + %s27]]
      %s176 = sld [smem:[#allocation7 + %s34]]
      %s177 = ssub.s32 %s175, %s176
      %p178 = scmp.eq.s32.totalorder %s177, 0
      %s180 = sadd.s32 %s179, 1
      %s181 = scalar_select %p178, %s179, %s180
      %p184 = pneg %p178
      %p185 = scmp.eq.s32.totalorder %s27, 15
      %p186 = por %p184, %p185
      %p187 = scmp.ne.s32.totalorder %s179, %s182
      %p188 = scmp.eq.s32.totalorder %s27, 0
      %p189 = por %p187, %p188
      %p190 = scmp.ne.s32.totalorder %s179, %s182
      %p191 = scmp.eq.s32.totalorder %s32, 15
      %p192 = por %p190, %p191
      %p193 = scmp.ne.s32.totalorder %s182, %s183
      %p194 = scmp.eq.s32.totalorder %s32, 0
      %p195 = por %p193, %p194
      %p196 = scmp.ne.s32.totalorder %s182, %s183
      %p197 = scmp.eq.s32.totalorder %s33, 15
      %p198 = por %p196, %p197
      %p200 = scmp.ne.s32.totalorder %s183, %s199
      %p201 = scmp.eq.s32.totalorder %s33, 0
      %p202 = por %p200, %p201
      %s204 = sadd.s32 %s203, 1
      %p207 = scmp.eq.s32.totalorder %s27, 15
      %p208 = scmp.ne.s32.totalorder %s203, %s205
      %p209 = scmp.eq.s32.totalorder %s27, 0
      %p210 = por %p208, %p209
      %p211 = scmp.ne.s32.totalorder %s203, %s205
      %p212 = scmp.eq.s32.totalorder %s32, 15
      %p213 = por %p211, %p212
      %p214 = scmp.ne.s32.totalorder %s205, %s206
      %p215 = scmp.eq.s32.totalorder %s32, 0
      %p216 = por %p214, %p215
      %p217 = scmp.ne.s32.totalorder %s205, %s206
      %p218 = scmp.eq.s32.totalorder %s33, 15
      %p219 = por %p217, %p218
      %p221 = scmp.ne.s32.totalorder %s206, %s220
      %p222 = scmp.eq.s32.totalorder %s33, 0
      %p223 = por %p221, %p222
      %s225 = sadd.s32 %s224, 1
      %p228 = scmp.eq.s32.totalorder %s27, 15
      %p229 = scmp.ne.s32.totalorder %s224, %s226
      %p230 = scmp.eq.s32.totalorder %s27, 0
      %p231 = por %p229, %p230
      %p232 = scmp.ne.s32.totalorder %s224, %s226
      %p233 = scmp.eq.s32.totalorder %s32, 15
      %p234 = por %p232, %p233
      %p235 = scmp.ne.s32.totalorder %s226, %s227
      %p236 = scmp.eq.s32.totalorder %s32, 0
      %p237 = por %p235, %p236
      %p238 = scmp.ne.s32.totalorder %s226, %s227
      %p239 = scmp.eq.s32.totalorder %s33, 15
      %p240 = por %p238, %p239
      %p242 = scmp.ne.s32.totalorder %s227, %s241
      %p243 = scmp.eq.s32.totalorder %s33, 0
      %p244 = por %p242, %p243
      %p245 = scmp.le.s32.totalorder 1, %s27
      %p246 = scmp.lt.s32.totalorder %s27, 17
      %p247 = pnand %p245, %p246
      %p248 = pneg %p247
      // Predicated region
      $region9: #{clcrec_forward.1} parent=5 // pred_check
        _
      $region10: #{clcrec_forward.1} parent=5 // pred_check_branch
        %250 = sbr.rel (%p247) target = $region12
      $region11: #{clcrec_forward.1} parent=5 // pred_region
        %s251 = ssub.s32 %s27, 1
        // Predicated region
        $region13: #{clcrec_forward.1} parent=11 // pred_check
          %p252 = pneg %p76
        $region14: #{clcrec_forward.1} parent=11 // pred_check_branch
          %254 = sbr.rel (%p252) target = $region16
        $region15: #{clcrec_forward.1} parent=11 // pred_region
          _
        $region16: #{clcrec_forward.1} parent=11 // pred_fallthru
          _
        // Predicated region
        $region17: #{clcrec_forward.1} parent=11 // pred_check
          %p255 = pneg %p97
        $region18: #{clcrec_forward.1} parent=11 // pred_check_branch
          %257 = sbr.rel (%p255) target = $region20
        $region19: #{clcrec_forward.1} parent=11 // pred_region
          _
        $region20: #{clcrec_forward.1} parent=11 // pred_fallthru
          _
        // Predicated region
        $region21: #{clcrec_forward.1} parent=11 // pred_check
          %p258 = pneg %p118
        $region22: #{clcrec_forward.1} parent=11 // pred_check_branch
          %260 = sbr.rel (%p258) target = $region24
        $region23: #{clcrec_forward.1} parent=11 // pred_region
          _
        $region24: #{clcrec_forward.1} parent=11 // pred_fallthru
          _
        // Predicated region
        $region25: #{clcrec_forward.1} parent=11 // pred_check
          %p261 = pneg %p139
        $region26: #{clcrec_forward.1} parent=11 // pred_check_branch
          %263 = sbr.rel (%p261) target = $region28
        $region27: #{clcrec_forward.1} parent=11 // pred_region
          _
        $region28: #{clcrec_forward.1} parent=11 // pred_fallthru
          _
        // Predicated region
        $region29: #{clcrec_forward.1} parent=11 // pred_check
          %p264 = pneg %p216
        $region30: #{clcrec_forward.1} parent=11 // pred_check_branch
          %266 = sbr.rel (%p264) target = $region32
        $region31: #{clcrec_forward.1} parent=11 // pred_region
          _
        $region32: #{clcrec_forward.1} parent=11 // pred_fallthru
          _
      $region12: #{clcrec_forward.1} parent=5 // pred_fallthru
        _
      %p267 = scmp.lt.s32.totalorder %s27, 16
      // Predicated region
      $region33: #{clcrec_forward.1} parent=5 // pred_check
        %p268 = pneg %p267
      $region34: #{clcrec_forward.1} parent=5 // pred_check_branch
        %270 = sbr.rel (%p268) target = $region36
      $region35: #{clcrec_forward.1} parent=5 // pred_region
        // Predicated region
        $region37: #{clcrec_forward.1} parent=35 // pred_check
          %p271 = pneg %p49
        $region38: #{clcrec_forward.1} parent=35 // pred_check_branch
          %273 = sbr.rel (%p271) target = $region40
        $region39: #{clcrec_forward.1} parent=35 // pred_region
          %s274 = sld [smem:[#allocation7 + %s27]]
          %p275 = scmp.lt.s32.totalorder %s274, 63
          %s276 = scalar_select %p275, %s274, 63
          %s277 = smul.addr %s276, 2
          %s278 = scalar_lea.vmem %s2, %s277
          %s279 = sld [smem:[#allocation7 + %s27]]
        $region40: #{clcrec_forward.1} parent=35 // pred_fallthru
          _
        // Predicated region
        $region41: #{clcrec_forward.1} parent=35 // pred_check
          %p280 = pneg %p161
        $region42: #{clcrec_forward.1} parent=35 // pred_check_branch
          %282 = sbr.rel (%p280) target = $region44
        $region43: #{clcrec_forward.1} parent=35 // pred_region
          %s283 = sld [smem:[#allocation6 + %s27]]
          %p284 = scmp.lt.s32.totalorder %s283, 31
          %s285 = scalar_select %p284, %s283, 31
          %s286 = scalar_lea.vmem %s7, %s285
          %s287 = sld [smem:[#allocation6 + %s27]]
        $region44: #{clcrec_forward.1} parent=35 // pred_fallthru
          _
        // Predicated region
        $region45: #{clcrec_forward.1} parent=35 // pred_check
          %p288 = pneg %p189
        $region46: #{clcrec_forward.1} parent=35 // pred_check_branch
          %290 = sbr.rel (%p288) target = $region48
        $region47: #{clcrec_forward.1} parent=35 // pred_region
          %s291 = sld [smem:[#allocation7 + %s27]]
          %p292 = scmp.lt.s32.totalorder %s291, 63
          %s293 = scalar_select %p292, %s291, 63
          %s294 = scalar_lea.vmem %s8, %s293
          %s295 = sld [smem:[#allocation7 + %s27]]
        $region48: #{clcrec_forward.1} parent=35 // pred_fallthru
          _
      $region36: #{clcrec_forward.1} parent=5 // pred_fallthru
        _
      %p296 = scmp.le.s32.totalorder 1, %s27
      %p297 = scmp.lt.s32.totalorder %s27, 17
      %p298 = pnand %p296, %p297
      %p299 = pneg %p298
      // Predicated region
      $region49: #{clcrec_forward.1} parent=5 // pred_check
        _
      $region50: #{clcrec_forward.1} parent=5 // pred_check_branch
        %301 = sbr.rel (%p298) target = $region52
      $region51: #{clcrec_forward.1} parent=5 // pred_region
        %s302 = ssub.s32 %s27, 1
        %s303 = sld [smem:[#allocation7 + %s32]]
        %p304 = scmp.lt.s32.totalorder %s303, 63
        %s305 = scalar_select %p304, %s303, 63
        %s306 = smul.addr %s305, 2
        %s307 = scalar_lea.vmem %s2, %s306
        %p308 = pneg %p55
        %p309 = pneg %p52
        %p310 = pneg %p76
        %p311 = pneg %p73
        %p312 = pneg %p97
        %p313 = pneg %p94
        %p314 = pneg %p118
        %p315 = pneg %p115
        %p316 = pneg %p139
        %p317 = pneg %p136
        %s318 = sld [smem:[#allocation6 + %s32]]
        %p319 = scmp.lt.s32.totalorder %s318, 31
        %s320 = scalar_select %p319, %s318, 31
        %s321 = scalar_lea.vmem %s7, %s320
        %p322 = pneg %p167
        %p323 = pneg %p164
        %s324 = sld [smem:[#allocation7 + %s32]]
        %p325 = scmp.lt.s32.totalorder %s324, 63
        %s326 = scalar_select %p325, %s324, 63
        %s327 = scalar_lea.vmem %s8, %s326
        %p328 = pneg %p195
        %p329 = pneg %p192
        %p330 = pneg %p216
        %p331 = pneg %p213
        %p332 = pneg %p237
        %p333 = pneg %p234
        %s334 = sld [smem:[#allocation7 + %s32]]
        %p335 = scmp.lt.s32.totalorder %s334, 63
        %s336 = scalar_select %p335, %s334, 63
        %s337 = smul.addr %s336, 2
        %s338 = scalar_lea.vmem %s2, %s337
        %s339 = sld [smem:[#allocation7 + %s32]]
        %s340 = sld [smem:[#allocation6 + %s32]]
        %p341 = scmp.lt.s32.totalorder %s340, 31
        %s342 = scalar_select %p341, %s340, 31
        %s343 = scalar_lea.vmem %s7, %s342
        %s344 = sld [smem:[#allocation6 + %s32]]
        %s345 = sld [smem:[#allocation7 + %s32]]
        %p346 = scmp.lt.s32.totalorder %s345, 63
        %s347 = scalar_select %p346, %s345, 63
        %s348 = scalar_lea.vmem %s8, %s347
        %s349 = sld [smem:[#allocation7 + %s32]]
        %v351 = vld [vmem:[%s338] sm:$0x3]
        %v352 = vlaneseq
        %vm353 = vcmp.ge.s32.totalorder %v352, 0
        %vm354 = vcmp.lt.s32.totalorder %v352, 256
        %vm355 = vmand %vm353, %vm354
        %s356 = sshra.s32 %s32, 3
        %s357 = sand.u32 %s32, 7
        %s358 = sshra.s32 %s32, 3
        %s359 = sand.u32 %s32, 7
        %s360 = smul.u32 %s356, 2
        %s361 = smul.u32 %s360, 8
        %s362 = sadd.s32 %s361, %s359
        %s363 = scalar_lea.vmem [#allocation2], %s362
        %364 = vst.msk [vmem:[%s363] ss:$8 sm:$0x3] %vm355, %v351
        %365 = vst.msk [vmem:[%s363] ss:$8 sm:$0x0] %vm355, %v351
        %v366 = vld [vmem:[%s348] sm:$0x1]
        %s367 = scalar_lea.vmem [#allocation3], %s32
        %vm368 = vcmask 516096
        %369 = vst.msk [vmem:[%s367] sm:$0x1] %vm368, %v366
        %v370 = vld [vmem:[%s343] sm:$0x1]
        %s371 = scalar_lea.vmem [#allocation4], %s32
        %372 = vst.msk [vmem:[%s371] sm:$0x1] %vm368, %v370
        %p373 = scmp.eq.s32.totalorder %s32, 15
        // Predicated region
        $region53: #{clcrec_forward.1} parent=51 // pred_check
          %p374 = pneg %p373
        $region54: #{clcrec_forward.1} parent=51 // pred_check_branch
          %376 = sbr.rel (%p374) target = $region56
        $region55: #{clcrec_forward.1} parent=51 // pred_region
          %v377 = vld [vmem:[#allocation2] sm:$0xff]
          %v378 = vld [vmem:[#allocation2 + $0x8] sm:$0xff]
          %v379 = vld [vmem:[#allocation2 + $0x10] sm:$0xff]
          %v380 = vld [vmem:[#allocation2 + $0x18] sm:$0xff]
          %v381 = vmul.f32 %v377, %v377
          %v382 = vmul.f32 %v378, %v378
          %v383 = vmul.f32 %v379, %v379
          %v384 = vmul.f32 %v380, %v380
          %v385 = vadd.f32 %v381, %v382
          %386 = vadd.xlane.f32.xlu0 %v385
          %v387 = vpop.xlane.xlu0 %386
          %v388 = vadd.f32 %v383, %v384
          %389 = vadd.xlane.f32.xlu0 %v388
          %v390 = vpop.xlane.xlu0 %389
          %v391 = vmax.f32 %v387, 1e-24
          %v392 = vmax.f32 %v390, 1e-24
          %v393 = vrsqrt.pop %v391
          %v394 = vrsqrt.pop %v392
          %v395 = vmul.f32 %v377, %v393
          %v396 = vmul.f32 %v378, %v393
          %v397 = vmul.f32 %v379, %v394
          %v398 = vmul.f32 %v380, %v394
          %v399 = vpack.c.bf16 %v397, %v395
          %v400 = vpack.c.bf16 %v398, %v396
          %v401 = vld [vmem:[%s3] sm:$0xff]
          %v402 = vld [vmem:[%s3 + $0x8] sm:$0xff]
          %v403 = vld [vmem:[%s3 + $0x10] sm:$0xff]
          %v404 = vld [vmem:[%s3 + $0x18] sm:$0xff]
          %v405 = vld [vmem:[%s3 + $0x20] sm:$0xff]
          %v406 = vld [vmem:[%s3 + $0x28] sm:$0xff]
          %v407 = vld [vmem:[%s3 + $0x30] sm:$0xff]
          %v408 = vld [vmem:[%s3 + $0x38] sm:$0xff]
          %v409 = vld [vmem:[%s3 + $0x40] sm:$0xff]
          %v410 = vld [vmem:[%s3 + $0x48] sm:$0xff]
          %v411 = vld [vmem:[%s3 + $0x50] sm:$0xff]
          %v412 = vld [vmem:[%s3 + $0x58] sm:$0xff]
          %v413 = vld [vmem:[%s3 + $0x60] sm:$0xff]
          %v414 = vld [vmem:[%s3 + $0x68] sm:$0xff]
          %v415 = vld [vmem:[%s3 + $0x70] sm:$0xff]
          %v416 = vld [vmem:[%s3 + $0x78] sm:$0xff]
          %v417 = vld [vmem:[%s3 + $0x80] sm:$0xff]
          %v418 = vld [vmem:[%s3 + $0x88] sm:$0xff]
          %v419 = vld [vmem:[%s3 + $0x90] sm:$0xff]
          %v420 = vld [vmem:[%s3 + $0x98] sm:$0xff]
          %v421 = vld [vmem:[%s3 + $0xa0] sm:$0xff]
          %v422 = vld [vmem:[%s3 + $0xa8] sm:$0xff]
          %v423 = vld [vmem:[%s3 + $0xb0] sm:$0xff]
          %v424 = vld [vmem:[%s3 + $0xb8] sm:$0xff]
          %v425 = vld [vmem:[%s3 + $0xc0] sm:$0xff]
          %v426 = vld [vmem:[%s3 + $0xc8] sm:$0xff]
          %v427 = vld [vmem:[%s3 + $0xd0] sm:$0xff]
          %v428 = vld [vmem:[%s3 + $0xd8] sm:$0xff]
          %v429 = vld [vmem:[%s3 + $0xe0] sm:$0xff]
          %v430 = vld [vmem:[%s3 + $0xe8] sm:$0xff]
          %v431 = vld [vmem:[%s3 + $0xf0] sm:$0xff]
          %v432 = vld [vmem:[%s3 + $0xf8] sm:$0xff]
          %v433 = vld [vmem:[%s4] sm:$0x3]
          %v435 = vlaneseq
          %v436 = vshrl.u32 %v435, 7
          %v437 = vsub.s32 0, %v436
          %v438 = vrot.slane %v433, %v437
          %v439 = vlaneseq
          %v440 = vshrl.u32 %v439, 7
          %v441 = vsub.s32 1, %v440
          %v442 = vrot.slane %v433, %v441
          %v477 = vunpack.c.l.b16 %v401
          %v478 = vunpack.c.h.b16 %v401
          %v479 = vunpack.c.l.b16 %v402
          %v480 = vunpack.c.h.b16 %v402
          %v481 = vunpack.c.l.b16 %v403
          %v482 = vunpack.c.h.b16 %v403
          %v483 = vunpack.c.l.b16 %v404
          %v484 = vunpack.c.h.b16 %v404
          %v485 = vunpack.c.l.b16 %v405
          %v486 = vunpack.c.h.b16 %v405
          %v487 = vunpack.c.l.b16 %v406
          %v488 = vunpack.c.h.b16 %v406
          %v489 = vunpack.c.l.b16 %v407
          %v490 = vunpack.c.h.b16 %v407
          %v491 = vunpack.c.l.b16 %v408
          %v492 = vunpack.c.h.b16 %v408
          %v493 = vunpack.c.l.b16 %v409
          %v494 = vunpack.c.h.b16 %v409
          %v495 = vunpack.c.l.b16 %v410
          %v496 = vunpack.c.h.b16 %v410
          %v497 = vunpack.c.l.b16 %v411
          %v498 = vunpack.c.h.b16 %v411
          %v499 = vunpack.c.l.b16 %v412
          %v500 = vunpack.c.h.b16 %v412
          %v501 = vunpack.c.l.b16 %v413
          %v502 = vunpack.c.h.b16 %v413
          %v503 = vunpack.c.l.b16 %v414
          %v504 = vunpack.c.h.b16 %v414
          %v505 = vunpack.c.l.b16 %v415
          %v506 = vunpack.c.h.b16 %v415
          %v507 = vunpack.c.l.b16 %v416
          %v508 = vunpack.c.h.b16 %v416
          %v509 = vunpack.c.l.b16 %v417
          %v510 = vunpack.c.h.b16 %v417
          %v511 = vunpack.c.l.b16 %v418
          %v512 = vunpack.c.h.b16 %v418
          %v513 = vunpack.c.l.b16 %v419
          %v514 = vunpack.c.h.b16 %v419
          %v515 = vunpack.c.l.b16 %v420
          %v516 = vunpack.c.h.b16 %v420
          %v517 = vunpack.c.l.b16 %v421
          %v518 = vunpack.c.h.b16 %v421
          %v519 = vunpack.c.l.b16 %v422
          %v520 = vunpack.c.h.b16 %v422
          %v521 = vunpack.c.l.b16 %v423
          %v522 = vunpack.c.h.b16 %v423
          %v523 = vunpack.c.l.b16 %v424
          %v524 = vunpack.c.h.b16 %v424
          %v525 = vunpack.c.l.b16 %v425
          %v526 = vunpack.c.h.b16 %v425
          %v527 = vunpack.c.l.b16 %v426
          %v528 = vunpack.c.h.b16 %v426
          %v529 = vunpack.c.l.b16 %v427
          %v530 = vunpack.c.h.b16 %v427
          %v531 = vunpack.c.l.b16 %v428
          %v532 = vunpack.c.h.b16 %v428
          %v533 = vunpack.c.l.b16 %v429
          %v534 = vunpack.c.h.b16 %v429
          %v535 = vunpack.c.l.b16 %v430
          %v536 = vunpack.c.h.b16 %v430
          %v537 = vunpack.c.l.b16 %v431
          %v538 = vunpack.c.h.b16 %v431
          %v539 = vunpack.c.l.b16 %v432
          %v540 = vunpack.c.h.b16 %v432
          %v541 = vpack.c.b16 %v479, %v477
          %v542 = vpack.c.b16 %v480, %v478
          %v543 = vpack.c.b16 %v483, %v481
          %v544 = vpack.c.b16 %v484, %v482
          %v545 = vpack.c.b16 %v487, %v485
          %v546 = vpack.c.b16 %v488, %v486
          %v547 = vpack.c.b16 %v491, %v489
          %v548 = vpack.c.b16 %v492, %v490
          %v549 = vpack.c.b16 %v495, %v493
          %v550 = vpack.c.b16 %v496, %v494
          %v551 = vpack.c.b16 %v499, %v497
          %v552 = vpack.c.b16 %v500, %v498
          %v553 = vpack.c.b16 %v503, %v501
          %v554 = vpack.c.b16 %v504, %v502
          %v555 = vpack.c.b16 %v507, %v505
          %v556 = vpack.c.b16 %v508, %v506
          %v557 = vpack.c.b16 %v511, %v509
          %v558 = vpack.c.b16 %v512, %v510
          %v559 = vpack.c.b16 %v515, %v513
          %v560 = vpack.c.b16 %v516, %v514
          %v561 = vpack.c.b16 %v519, %v517
          %v562 = vpack.c.b16 %v520, %v518
          %v563 = vpack.c.b16 %v523, %v521
          %v564 = vpack.c.b16 %v524, %v522
          %v565 = vpack.c.b16 %v527, %v525
          %v566 = vpack.c.b16 %v528, %v526
          %v567 = vpack.c.b16 %v531, %v529
          %v568 = vpack.c.b16 %v532, %v530
          %v569 = vpack.c.b16 %v535, %v533
          %v570 = vpack.c.b16 %v536, %v534
          %v571 = vpack.c.b16 %v539, %v537
          %v572 = vpack.c.b16 %v540, %v538
          %605 = vmatprep.subr.bf16.mxu0 %v542
          %606 = vmatpush1.bf16.msra.mxu0 %v541
          %607 = vmatprep.subr.bf16.mxu0 %v544
          %608 = vmatpush1.bf16.msra.mxu0 %v543
          %609 = vmatprep.subr.bf16.mxu0 %v546
          %610 = vmatpush1.bf16.msra.mxu0 %v545
          %611 = vmatprep.subr.bf16.mxu0 %v548
          %612 = vmatpush1.bf16.msra.mxu0 %v547
          %613 = vmatprep.subr.bf16.mxu0 %v550
          %614 = vmatpush1.bf16.msra.mxu0 %v549
          %615 = vmatprep.subr.bf16.mxu0 %v552
          %616 = vmatpush1.bf16.msra.mxu0 %v551
          %617 = vmatprep.subr.bf16.mxu0 %v554
          %618 = vmatpush1.bf16.msra.mxu0 %v553
          %619 = vmatprep.subr.bf16.mxu0 %v556
          %620 = vmatpush1.bf16.msra.mxu0 %v555
          %621 = vmatprep.subr.bf16.mxu0 %v558
          %622 = vmatpush1.bf16.msra.mxu0 %v557
          %623 = vmatprep.subr.bf16.mxu0 %v560
          %624 = vmatpush1.bf16.msra.mxu0 %v559
          %625 = vmatprep.subr.bf16.mxu0 %v562
          %626 = vmatpush1.bf16.msra.mxu0 %v561
          %627 = vmatprep.subr.bf16.mxu0 %v564
          %628 = vmatpush1.bf16.msra.mxu0 %v563
          %629 = vmatprep.subr.bf16.mxu0 %v566
          %630 = vmatpush1.bf16.msra.mxu0 %v565
          %631 = vmatprep.subr.bf16.mxu0 %v568
          %632 = vmatpush1.bf16.msra.mxu0 %v567
          %633 = vmatprep.subr.bf16.mxu0 %v570
          %634 = vmatpush1.bf16.msra.mxu0 %v569
          %635 = vmatprep.subr.bf16.mxu0 %v572
          %636 = vmatpush1.bf16.msra.mxu0 %v571
          %637 = vmatprep.mubr.bf16.mxu0 %v400
          %638 = vmatmul.mubr.bf16.gmra.mrb[0].mxu0 %v399
          %v639 = vpop.f32.mrb[0].mxu0
          %v640 = vadd.f32 %v438, %v639
          %v641 = vpop.f32.mrb[0].mxu0
          %v642 = vadd.f32 %v442, %v641
          %v643 = vpop.f32.mrb[0].mxu0
          %v644 = vadd.f32 %v438, %v643
          %v645 = vpop.f32.mrb[0].mxu0
          %v646 = vadd.f32 %v442, %v645
          %647 = vdwg.mxu0
          %v648 = vmul.f32 %v640, 0.01
          %v649 = vmul.f32 %v642, 0.01
          %v650 = vmul.f32 %v644, 0.01
          %v651 = vmul.f32 %v646, 0.01
          %v652 = vmax.f32 %v640, %v648
          %v653 = vmax.f32 %v642, %v649
          %v654 = vmax.f32 %v644, %v650
          %v655 = vmax.f32 %v646, %v651
          %v656 = vpack.c.bf16 %v654, %v652
          %v657 = vpack.c.bf16 %v655, %v653
          %v658 = vld [vmem:[%s5] sm:$0xf]
          %v659 = vld [vmem:[%s5 + $0x4] sm:$0xf]
          %v660 = vld [vmem:[%s5 + $0x8] sm:$0xf]
          %v661 = vld [vmem:[%s5 + $0xc] sm:$0xf]
          %v662 = vld [vmem:[%s5 + $0x10] sm:$0xf]
          %v663 = vld [vmem:[%s5 + $0x14] sm:$0xf]
          %v664 = vld [vmem:[%s5 + $0x18] sm:$0xf]
          %v665 = vld [vmem:[%s5 + $0x1c] sm:$0xf]
          %v666 = vld [vmem:[%s5 + $0x20] sm:$0xf]
          %v667 = vld [vmem:[%s5 + $0x24] sm:$0xf]
          %v668 = vld [vmem:[%s5 + $0x28] sm:$0xf]
          %v669 = vld [vmem:[%s5 + $0x2c] sm:$0xf]
          %v670 = vld [vmem:[%s5 + $0x30] sm:$0xf]
          %v671 = vld [vmem:[%s5 + $0x34] sm:$0xf]
          %v672 = vld [vmem:[%s5 + $0x38] sm:$0xf]
          %v673 = vld [vmem:[%s5 + $0x3c] sm:$0xf]
          %v674 = vld [vmem:[%s5 + $0x40] sm:$0xf]
          %v675 = vld [vmem:[%s5 + $0x44] sm:$0xf]
          %v676 = vld [vmem:[%s5 + $0x48] sm:$0xf]
          %v677 = vld [vmem:[%s5 + $0x4c] sm:$0xf]
          %v678 = vld [vmem:[%s5 + $0x50] sm:$0xf]
          %v679 = vld [vmem:[%s5 + $0x54] sm:$0xf]
          %v680 = vld [vmem:[%s5 + $0x58] sm:$0xf]
          %v681 = vld [vmem:[%s5 + $0x5c] sm:$0xf]
          %v682 = vld [vmem:[%s5 + $0x60] sm:$0xf]
          %v683 = vld [vmem:[%s5 + $0x64] sm:$0xf]
          %v684 = vld [vmem:[%s5 + $0x68] sm:$0xf]
          %v685 = vld [vmem:[%s5 + $0x6c] sm:$0xf]
          %v686 = vld [vmem:[%s5 + $0x70] sm:$0xf]
          %v687 = vld [vmem:[%s5 + $0x74] sm:$0xf]
          %v688 = vld [vmem:[%s5 + $0x78] sm:$0xf]
          %v689 = vld [vmem:[%s5 + $0x7c] sm:$0xf]
          %v690 = vld [vmem:[%s6] sm:$0x1]
          %v692 = vlaneseq
          %v693 = vshrl.u32 %v692, 7
          %v694 = vsub.s32 0, %v693
          %v695 = vrot.slane %v690, %v694
          %v729 = vunpack.c.l.b16 %v658
          %v730 = vunpack.c.l.b16 %v659
          %v731 = vunpack.c.l.b16 %v660
          %v732 = vunpack.c.l.b16 %v661
          %v733 = vunpack.c.l.b16 %v662
          %v734 = vunpack.c.l.b16 %v663
          %v735 = vunpack.c.l.b16 %v664
          %v736 = vunpack.c.l.b16 %v665
          %v737 = vunpack.c.l.b16 %v666
          %v738 = vunpack.c.l.b16 %v667
          %v739 = vunpack.c.l.b16 %v668
          %v740 = vunpack.c.l.b16 %v669
          %v741 = vunpack.c.l.b16 %v670
          %v742 = vunpack.c.l.b16 %v671
          %v743 = vunpack.c.l.b16 %v672
          %v744 = vunpack.c.l.b16 %v673
          %v745 = vunpack.c.l.b16 %v674
          %v746 = vunpack.c.l.b16 %v675
          %v747 = vunpack.c.l.b16 %v676
          %v748 = vunpack.c.l.b16 %v677
          %v749 = vunpack.c.l.b16 %v678
          %v750 = vunpack.c.l.b16 %v679
          %v751 = vunpack.c.l.b16 %v680
          %v752 = vunpack.c.l.b16 %v681
          %v753 = vunpack.c.l.b16 %v682
          %v754 = vunpack.c.l.b16 %v683
          %v755 = vunpack.c.l.b16 %v684
          %v756 = vunpack.c.l.b16 %v685
          %v757 = vunpack.c.l.b16 %v686
          %v758 = vunpack.c.l.b16 %v687
          %v759 = vunpack.c.l.b16 %v688
          %v760 = vunpack.c.l.b16 %v689
          %v761 = vpack.c.b16 %v730, %v729
          %v762 = vpack.c.b16 %v732, %v731
          %v763 = vpack.c.b16 %v734, %v733
          %v764 = vpack.c.b16 %v736, %v735
          %v765 = vpack.c.b16 %v738, %v737
          %v766 = vpack.c.b16 %v740, %v739
          %v767 = vpack.c.b16 %v742, %v741
          %v768 = vpack.c.b16 %v744, %v743
          %v769 = vpack.c.b16 %v746, %v745
          %v770 = vpack.c.b16 %v748, %v747
          %v771 = vpack.c.b16 %v750, %v749
          %v772 = vpack.c.b16 %v752, %v751
          %v773 = vpack.c.b16 %v754, %v753
          %v774 = vpack.c.b16 %v756, %v755
          %v775 = vpack.c.b16 %v758, %v757
          %v776 = vpack.c.b16 %v760, %v759
          %793 = vmatprep.subr.bf16.mxu0 0
          %794 = vmatpush1.bf16.msra.mxu0 %v761
          %795 = vmatprep.subr.bf16.mxu0 0
          %796 = vmatpush1.bf16.msra.mxu0 %v762
          %797 = vmatprep.subr.bf16.mxu0 0
          %798 = vmatpush1.bf16.msra.mxu0 %v763
          %799 = vmatprep.subr.bf16.mxu0 0
          %800 = vmatpush1.bf16.msra.mxu0 %v764
          %801 = vmatprep.subr.bf16.mxu0 0
          %802 = vmatpush1.bf16.msra.mxu0 %v765
          %803 = vmatprep.subr.bf16.mxu0 0
          %804 = vmatpush1.bf16.msra.mxu0 %v766
          %805 = vmatprep.subr.bf16.mxu0 0
          %806 = vmatpush1.bf16.msra.mxu0 %v767
          %807 = vmatprep.subr.bf16.mxu0 0
          %808 = vmatpush1.bf16.msra.mxu0 %v768
          %809 = vmatprep.subr.bf16.mxu0 0
          %810 = vmatpush1.bf16.msra.mxu0 %v769
          %811 = vmatprep.subr.bf16.mxu0 0
          %812 = vmatpush1.bf16.msra.mxu0 %v770
          %813 = vmatprep.subr.bf16.mxu0 0
          %814 = vmatpush1.bf16.msra.mxu0 %v771
          %815 = vmatprep.subr.bf16.mxu0 0
          %816 = vmatpush1.bf16.msra.mxu0 %v772
          %817 = vmatprep.subr.bf16.mxu0 0
          %818 = vmatpush1.bf16.msra.mxu0 %v773
          %819 = vmatprep.subr.bf16.mxu0 0
          %820 = vmatpush1.bf16.msra.mxu0 %v774
          %821 = vmatprep.subr.bf16.mxu0 0
          %822 = vmatpush1.bf16.msra.mxu0 %v775
          %823 = vmatprep.subr.bf16.mxu0 0
          %824 = vmatpush1.bf16.msra.mxu0 %v776
          %825 = vmatprep.mubr.bf16.mxu0 %v657
          %826 = vmatmul.mubr.bf16.gmra.mrb[0].mxu0 %v656
          %v827 = vpop.f32.mrb[0].mxu0
          %v828 = vadd.f32 %v695, %v827
          %v829 = vpop.f32.mrb[0].mxu0
          %v830 = vpop.f32.mrb[0].mxu0
          %v831 = vadd.f32 %v695, %v830
          %v832 = vpop.f32.mrb[0].mxu0
          %833 = vdwg.mxu0
          %v834 = vld [vmem:[#allocation3] sm:$0xff]
          %v835 = vld [vmem:[#allocation3 + $0x8] sm:$0xff]
          %v836 = vld [vmem:[#allocation4] sm:$0xff]
          %v837 = vld [vmem:[#allocation4 + $0x8] sm:$0xff]
          %v838 = vld [vmem:[%s9] sm:$0xff]
          %v839 = vld [vmem:[%s9 + $0x8] sm:$0xff]
          %841 = vset.pattern.permute.xlu0 0
          %842 = vperm.xlu0 %841, %v838
          %v843 = vpop.permute.xlu0 %842
          %846 = vset.pattern.permute.xlu0 0
          %847 = vperm.xlu0 %846, %v839
          %v848 = vpop.permute.xlu0 %847
          %v850 = vmul.f32 %v843, %v828
          %v851 = vmul.f32 %v848, %v831
          %v852 = vsub.f32 1.0, %v838
          %v853 = vsub.f32 1.0, %v839
          %855 = vset.pattern.permute.xlu0 0
          %856 = vperm.xlu0 %855, %v852
          %v857 = vpop.permute.xlu0 %856
          %860 = vset.pattern.permute.xlu0 0
          %861 = vperm.xlu0 %860, %v853
          %v862 = vpop.permute.xlu0 %861
          %v864 = vmul.f32 %v857, %v834
          %v865 = vmul.f32 %v862, %v835
          %v866 = vadd.f32 %v850, %v864
          %v867 = vadd.f32 %v851, %v865
          %v868 = vmul.f32 %v834, %v834
          %v869 = vmul.f32 %v835, %v835
          %vm870 = vcmask 523264
          %v871 = vsel %vm870, %v868, 0.0
          %872 = vadd.xlane.f32.xlu0 %v871
          %v873 = vpop.xlane.xlu0 %872
          %v874 = vsel %vm870, %v869, 0.0
          %875 = vadd.xlane.f32.xlu0 %v874
          %v876 = vpop.xlane.xlu0 %875
          %v877 = vmax.f32 %v873, 1e-24
          %v878 = vmax.f32 %v876, 1e-24
          %v879 = vrsqrt.pop %v877
          %v880 = vrsqrt.pop %v878
          %v881 = vmul.f32 %v834, %v879
          %v882 = vmul.f32 %v835, %v880
          %v883 = vmul.f32 %v828, %v828
          %v884 = vmul.f32 %v831, %v831
          %v885 = vsel %vm870, %v883, 0.0
          %886 = vadd.xlane.f32.xlu0 %v885
          %v887 = vpop.xlane.xlu0 %886
          %v888 = vsel %vm870, %v884, 0.0
          %889 = vadd.xlane.f32.xlu0 %v888
          %v890 = vpop.xlane.xlu0 %889
          %v891 = vmax.f32 %v887, 1e-24
          %v892 = vmax.f32 %v890, 1e-24
          %v893 = vrsqrt.pop %v891
          %v894 = vrsqrt.pop %v892
          %v895 = vmul.f32 %v828, %v893
          %v896 = vmul.f32 %v831, %v894
          %v897 = vpack.c.bf16 %v882, %v881
          %v898 = vpack.c.bf16 %v896, %v895
          %v900 = vsel %vm870, %v897, 0
          %v903 = vsel %vm870, %v898, 0
          %905 = vmatprep.subr.bf16.mxu0 0
          %906 = vmatpush1.bf16.xpose.msra.mxu0 %v903
          %907 = vmatprep.subr.bf16.mxu0 0
          %908 = vmatpush1.bf16.xpose.msra.mxu0 0
          %909 = vmatprep.subr.bf16.mxu0 0
          %910 = vmatpush1.bf16.xpose.msra.mxu0 0
          %911 = vmatprep.subr.bf16.mxu0 0
          %912 = vmatpush1.bf16.xpose.msra.mxu0 0
          %913 = vmatprep.subr.bf16.mxu0 0
          %914 = vmatpush1.bf16.xpose.msra.mxu0 0
          %915 = vmatprep.subr.bf16.mxu0 0
          %916 = vmatpush1.bf16.xpose.msra.mxu0 0
          %917 = vmatprep.subr.bf16.mxu0 0
          %918 = vmatpush1.bf16.xpose.msra.mxu0 0
          %919 = vmatprep.subr.bf16.mxu0 0
          %920 = vmatpush1.bf16.xpose.msra.mxu0 0
          %921 = vmatprep.subr.bf16.mxu0 0
          %922 = vmatpush1.bf16.xpose.msra.mxu0 0
          %923 = vmatprep.subr.bf16.mxu0 0
          %924 = vmatpush1.bf16.xpose.msra.mxu0 0
          %925 = vmatprep.subr.bf16.mxu0 0
          %926 = vmatpush1.bf16.xpose.msra.mxu0 0
          %927 = vmatprep.subr.bf16.mxu0 0
          %928 = vmatpush1.bf16.xpose.msra.mxu0 0
          %929 = vmatprep.subr.bf16.mxu0 0
          %930 = vmatpush1.bf16.xpose.msra.mxu0 0
          %931 = vmatprep.subr.bf16.mxu0 0
          %932 = vmatpush1.bf16.xpose.msra.mxu0 0
          %933 = vmatprep.subr.bf16.mxu0 0
          %934 = vmatpush1.bf16.xpose.msra.mxu0 0
          %935 = vmatprep.subr.bf16.mxu0 0
          %936 = vmatpush1.bf16.xpose.msra.mxu0 0
          %937 = vmatprep.mubr.bf16.mxu0 0
          %938 = vmatmul.mubr.bf16.gmra.mrb[0].mxu0 %v900
          %v939 = vpop.f32.mrb[0].mxu0
          %v940 = vadd.f32 0.0, %v939
          %v941 = vpop.f32.mrb[0].mxu0
          %v942 = vpop.f32.mrb[0].mxu0
          %v943 = vadd.f32 0.0, %v942
          %v944 = vpop.f32.mrb[0].mxu0
          %945 = vdwg.mxu0
          %v946 = vmul.f32 %v940, 0.5
          %v947 = vmul.f32 %v943, 0.5
          %vm948 = vcmask 130048
          %v949 = vsel %vm948, %v946, -inf
          %950 = vmax.xlane.f32.xlu0 %v949
          %v951 = vpop.xlane.xlu0 %950
          %v952 = vsel %vm948, %v947, -inf
          %953 = vmax.xlane.f32.xlu0 %v952
          %v954 = vpop.xlane.xlu0 %953
          %v955 = vsub.f32 %v946, %v951
          %v956 = vsub.f32 %v947, %v954
          %v957 = vmul.f32 %v955, 1.442695
          %v958 = vpow.pop %v957
          %v959 = vmul.f32 %v956, 1.442695
          %v960 = vpow.pop %v959
          %v961 = vsel %vm948, %v958, 0.0
          %962 = vadd.xlane.f32.xlu0 %v961
          %v963 = vpop.xlane.xlu0 %962
          %v964 = vsel %vm948, %v960, 0.0
          %965 = vadd.xlane.f32.xlu0 %v964
          %v966 = vpop.xlane.xlu0 %965
          %v967 = vlog2.pop %v963
          %v968 = vmul.f32 %v967, 0.6931472
          %v969 = vlog2.pop %v966
          %v970 = vmul.f32 %v969, 0.6931472
          %v971 = vadd.f32 %v968, %v951
          %v972 = vadd.f32 %v970, %v954
          %v973 = vunpack.c.l.bf16 %v897
          %v974 = vunpack.c.h.bf16 %v897
          %v975 = vunpack.c.l.bf16 %v898
          %v976 = vunpack.c.h.bf16 %v898
          %v977 = vmul.f32 %v973, %v975
          %v978 = vmul.f32 %v974, %v976
          %v979 = vsel %vm870, %v977, 0.0
          %980 = vadd.xlane.f32.xlu0 %v979
          %v981 = vpop.xlane.xlu0 %980
          %v982 = vsel %vm870, %v978, 0.0
          %983 = vadd.xlane.f32.xlu0 %v982
          %v984 = vpop.xlane.xlu0 %983
          %v985 = vmul.f32 %v981, 0.5
          %v986 = vmul.f32 %v984, 0.5
          %v987 = vsub.f32 %v971, %v985
          %v988 = vsub.f32 %v972, %v986
          %vm989 = vcmask 7168
          %v990 = vsel %vm989, %v987, 0.0
          %v991 = vsel %vm989, %v988, 0.0
          %v992 = vadd.f32 %v990, %v991
          %993 = vadd.xlane.f32.xlu0 %v992
          %v994 = vpop.xlane.xlu0 %993
          %v995 = vrot.slane %v994, 4
          %v996 = vadd.f32 %v994, %v995
          %v997 = vrot.slane %v996, 2
          %v998 = vadd.f32 %v996, %v997
          %v999 = vrot.slane %v998, 1
          %v1000 = vadd.f32 %v998, %v999
          %s1001 = vtos %v1000
          %v1002 = vrcp.pop 16.0
          %s1003 = vtos %v1002
          %s1004 = smul.f32 %s1001, %s1003
          %v1005 = vpack.c.bf16 %v837, %v836
          %v1006 = vpack.c.bf16 %v867, %v866
          %v1008 = vsel %vm870, %v1005, 0
          %v1011 = vsel %vm870, %v1006, 0
          %1013 = vmatprep.subr.bf16.mxu0 0
          %1014 = vmatpush1.bf16.xpose.msra.mxu0 %v1011
          %1015 = vmatprep.subr.bf16.mxu0 0
          %1016 = vmatpush1.bf16.xpose.msra.mxu0 0
          %1017 = vmatprep.subr.bf16.mxu0 0
          %1018 = vmatpush1.bf16.xpose.msra.mxu0 0
          %1019 = vmatprep.subr.bf16.mxu0 0
          %1020 = vmatpush1.bf16.xpose.msra.mxu0 0
          %1021 = vmatprep.subr.bf16.mxu0 0
          %1022 = vmatpush1.bf16.xpose.msra.mxu0 0
          %1023 = vmatprep.subr.bf16.mxu0 0
          %1024 = vmatpush1.bf16.xpose.msra.mxu0 0
          %1025 = vmatprep.subr.bf16.mxu0 0
          %1026 = vmatpush1.bf16.xpose.msra.mxu0 0
          %1027 = vmatprep.subr.bf16.mxu0 0
          %1028 = vmatpush1.bf16.xpose.msra.mxu0 0
          %1029 = vmatprep.subr.bf16.mxu0 0
          %1030 = vmatpush1.bf16.xpose.msra.mxu0 0
          %1031 = vmatprep.subr.bf16.mxu0 0
          %1032 = vmatpush1.bf16.xpose.msra.mxu0 0
          %1033 = vmatprep.subr.bf16.mxu0 0
          %1034 = vmatpush1.bf16.xpose.msra.mxu0 0
          %1035 = vmatprep.subr.bf16.mxu0 0
          %1036 = vmatpush1.bf16.xpose.msra.mxu0 0
          %1037 = vmatprep.subr.bf16.mxu0 0
          %1038 = vmatpush1.bf16.xpose.msra.mxu0 0
          %1039 = vmatprep.subr.bf16.mxu0 0
          %1040 = vmatpush1.bf16.xpose.msra.mxu0 0
          %1041 = vmatprep.subr.bf16.mxu0 0
          %1042 = vmatpush1.bf16.xpose.msra.mxu0 0
          %1043 = vmatprep.subr.bf16.mxu0 0
          %1044 = vmatpush1.bf16.xpose.msra.mxu0 0
          %1045 = vmatprep.mubr.bf16.mxu0 0
          %1046 = vmatmul.mubr.bf16.gmra.mrb[0].mxu0 %v1008
          %v1047 = vpop.f32.mrb[0].mxu0
          %v1048 = vadd.f32 0.0, %v1047
          %v1049 = vpop.f32.mrb[0].mxu0
          %v1050 = vpop.f32.mrb[0].mxu0
          %v1051 = vadd.f32 0.0, %v1050
          %v1052 = vpop.f32.mrb[0].mxu0
          %1053 = vdwg.mxu0
          %v1054 = vmul.f32 %v1048, 0.5
          %v1055 = vmul.f32 %v1051, 0.5
          %v1056 = vsel %vm948, %v1054, -inf
          %1057 = vmax.xlane.f32.xlu0 %v1056
          %v1058 = vpop.xlane.xlu0 %1057
          %v1059 = vsel %vm948, %v1055, -inf
          %1060 = vmax.xlane.f32.xlu0 %v1059
          %v1061 = vpop.xlane.xlu0 %1060
          %v1062 = vsub.f32 %v1054, %v1058
          %v1063 = vsub.f32 %v1055, %v1061
          %v1064 = vmul.f32 %v1062, 1.442695
          %v1065 = vpow.pop %v1064
          %v1066 = vmul.f32 %v1063, 1.442695
          %v1067 = vpow.pop %v1066
          %v1068 = vsel %vm948, %v1065, 0.0
          %1069 = vadd.xlane.f32.xlu0 %v1068
          %v1070 = vpop.xlane.xlu0 %1069
          %v1071 = vsel %vm948, %v1067, 0.0
          %1072 = vadd.xlane.f32.xlu0 %v1071
          %v1073 = vpop.xlane.xlu0 %1072
          %v1074 = vlog2.pop %v1070
          %v1075 = vmul.f32 %v1074, 0.6931472
          %v1076 = vlog2.pop %v1073
          %v1077 = vmul.f32 %v1076, 0.6931472
          %v1078 = vadd.f32 %v1075, %v1058
          %v1079 = vadd.f32 %v1077, %v1061
          %v1080 = vunpack.c.l.bf16 %v1005
          %v1081 = vunpack.c.h.bf16 %v1005
          %v1082 = vunpack.c.l.bf16 %v1006
          %v1083 = vunpack.c.h.bf16 %v1006
          %v1084 = vmul.f32 %v1080, %v1082
          %v1085 = vmul.f32 %v1081, %v1083
          %v1086 = vsel %vm870, %v1084, 0.0
          %1087 = vadd.xlane.f32.xlu0 %v1086
          %v1088 = vpop.xlane.xlu0 %1087
          %v1089 = vsel %vm870, %v1085, 0.0
          %1090 = vadd.xlane.f32.xlu0 %v1089
          %v1091 = vpop.xlane.xlu0 %1090
          %v1092 = vmul.f32 %v1088, 0.5
          %v1093 = vmul.f32 %v1091, 0.5
          %v1094 = vsub.f32 %v1078, %v1092
          %v1095 = vsub.f32 %v1079, %v1093
          %v1096 = vsel %vm989, %v1094, 0.0
          %v1097 = vsel %vm989, %v1095, 0.0
          %v1098 = vadd.f32 %v1096, %v1097
          %1099 = vadd.xlane.f32.xlu0 %v1098
          %v1100 = vpop.xlane.xlu0 %1099
          %v1101 = vrot.slane %v1100, 4
          %v1102 = vadd.f32 %v1100, %v1101
          %v1103 = vrot.slane %v1102, 2
          %v1104 = vadd.f32 %v1102, %v1103
          %v1105 = vrot.slane %v1104, 1
          %v1106 = vadd.f32 %v1104, %v1105
          %s1107 = vtos %v1106
          %v1108 = vrcp.pop 16.0
          %s1109 = vtos %v1108
          %s1110 = smul.f32 %s1107, %s1109
          %v1111 = vmul.f32 %v836, %v836
          %v1112 = vmul.f32 %v837, %v837
          %v1113 = vsel %vm870, %v1111, 0.0
          %1114 = vadd.xlane.f32.xlu0 %v1113
          %v1115 = vpop.xlane.xlu0 %1114
          %v1116 = vsel %vm870, %v1112, 0.0
          %1117 = vadd.xlane.f32.xlu0 %v1116
          %v1118 = vpop.xlane.xlu0 %1117
          %v1119 = vrsqrt.pop %v1115
          %v1120 = vmul.f32 %v1115, %v1119
          %vm1121 = vcmp.eq.f32.partialorder %v1115, inf
          %v1122 = vsel %vm1121, %v1115, %v1120
          %vm1123 = vcmp.eq.f32.partialorder %v1115, 0.0
          %v1124 = vand.u32 %v1115, 2147483648
          %v1125 = vsel %vm1123, %v1124, %v1122
          %v1126 = vrsqrt.pop %v1118
          %v1127 = vmul.f32 %v1118, %v1126
          %vm1128 = vcmp.eq.f32.partialorder %v1118, inf
          %v1129 = vsel %vm1128, %v1118, %v1127
          %vm1130 = vcmp.eq.f32.partialorder %v1118, 0.0
          %v1131 = vand.u32 %v1118, 2147483648
          %v1132 = vsel %vm1130, %v1131, %v1129
          %v1133 = vsel %vm989, %v1125, 0.0
          %v1134 = vsel %vm989, %v1132, 0.0
          %v1135 = vadd.f32 %v1133, %v1134
          %1136 = vadd.xlane.f32.xlu0 %v1135
          %v1137 = vpop.xlane.xlu0 %1136
          %v1138 = vrot.slane %v1137, 4
          %v1139 = vadd.f32 %v1137, %v1138
          %v1140 = vrot.slane %v1139, 2
          %v1141 = vadd.f32 %v1139, %v1140
          %v1142 = vrot.slane %v1141, 1
          %v1143 = vadd.f32 %v1141, %v1142
          %s1144 = vtos %v1143
          %v1145 = vrcp.pop 16.0
          %s1146 = vtos %v1145
          %s1147 = smul.f32 %s1144, %s1146
          %v1148 = vrsqrt.pop %v873
          %v1149 = vmul.f32 %v873, %v1148
          %vm1150 = vcmp.eq.f32.partialorder %v873, inf
          %v1151 = vsel %vm1150, %v873, %v1149
          %vm1152 = vcmp.eq.f32.partialorder %v873, 0.0
          %v1153 = vand.u32 %v873, 2147483648
          %v1154 = vsel %vm1152, %v1153, %v1151
          %v1155 = vrsqrt.pop %v876
          %v1156 = vmul.f32 %v876, %v1155
          %vm1157 = vcmp.eq.f32.partialorder %v876, inf
          %v1158 = vsel %vm1157, %v876, %v1156
          %vm1159 = vcmp.eq.f32.partialorder %v876, 0.0
          %v1160 = vand.u32 %v876, 2147483648
          %v1161 = vsel %vm1159, %v1160, %v1158
          %v1162 = vsel %vm989, %v1154, 0.0
          %v1163 = vsel %vm989, %v1161, 0.0
          %v1164 = vadd.f32 %v1162, %v1163
          %1165 = vadd.xlane.f32.xlu0 %v1164
          %v1166 = vpop.xlane.xlu0 %1165
          %v1167 = vrot.slane %v1166, 4
          %v1168 = vadd.f32 %v1166, %v1167
          %v1169 = vrot.slane %v1168, 2
          %v1170 = vadd.f32 %v1168, %v1169
          %v1171 = vrot.slane %v1170, 1
          %v1172 = vadd.f32 %v1170, %v1171
          %s1173 = vtos %v1172
          %v1174 = vrcp.pop 16.0
          %s1175 = vtos %v1174
          %s1176 = smul.f32 %s1173, %s1175
          %s1177 = sadd.f32 %s1147, %s1176
          %s1178 = smul.f32 %s1177, 0.5
          %s1179 = smul.f32 %s1004, 0.5
          %s1180 = smul.f32 %s1110, 0.5
          %s1181 = sadd.f32 %s1179, %s1180
          %s1182 = smul.f32 %s1178, 0.1
          %s1183 = sadd.f32 %s1181, %s1182
          %s1184 = scalar_lea.smem [#allocation8], 0
          %1185 = sst [smem:[%s1184]] %s1183
        $region56: #{clcrec_forward.1} parent=51 // pred_fallthru
          _
        // Predicated region
        $region57: #{clcrec_forward.1} parent=51 // pred_check
          %p1186 = pneg %p234
        $region58: #{clcrec_forward.1} parent=51 // pred_check_branch
          %1188 = sbr.rel (%p1186) target = $region60
        $region59: #{clcrec_forward.1} parent=51 // pred_region
          %s1190 = ssub.s32 16, 16
          %1191 = vsyncadd [#allocation9], %s1190
          %1194 = dma.smem_to_hbm [#allocation8], 16, %s10, [#allocation9]
        $region60: #{clcrec_forward.1} parent=51 // pred_fallthru
          _
        // Predicated region
        $region61: #{clcrec_forward.1} parent=51 // pred_check
          %p1195 = pneg %p234
        $region62: #{clcrec_forward.1} parent=51 // pred_check_branch
          %1197 = sbr.rel (%p1195) target = $region64
        $region63: #{clcrec_forward.1} parent=51 // pred_region
          %1198 = dma.done [#allocation9], 16
        $region64: #{clcrec_forward.1} parent=51 // pred_fallthru
          _
        %1199 = sfence
      $region52: #{clcrec_forward.1} parent=5 // pred_fallthru
        _
      %p1200 = scmp.le.s32.totalorder 2, %s27
      // Predicated region
      $region65: #{clcrec_forward.1} parent=5 // pred_check
        %p1201 = pneg %p1200
      $region66: #{clcrec_forward.1} parent=5 // pred_check_branch
        %1203 = sbr.rel (%p1201) target = $region68
      $region67: #{clcrec_forward.1} parent=5 // pred_region
        %s1204 = ssub.s32 %s27, 2
      $region68: #{clcrec_forward.1} parent=5 // pred_fallthru
        _
    $region6: #{clcrec_forward.1} parent=1 // loop_footer
      %s31 = sadd.s32 1, %s27
    $region7: #{clcrec_forward.1} parent=1 // loop_footer_branch
      %26 = sbr.rel target = $region3
    $region8: #{clcrec_forward.1} parent=1 // loop_exit
      _
    %1205 = vsyncpa [#allocation9], 1
    %s1206 = scalar_lea.sflag [#allocation9], 1
    %1207 = vsyncpa %s1206, 1

</llo_original>
